<compile_context>
chip_gen: v7x
topology: tpu7x:2x2x1
jax: 0.10.0
libtpu: 0.0.40
codegen_flags: <defaults>
</compile_context>

<pallas_src>
import functools

import jax
import jax.numpy as jnp
from jax.experimental import pallas as pl
from jax.experimental.pallas import tpu as pltpu


def _round_up(x, m):
    return ((x + m - 1) // m) * m


def _vmem_capacity_bytes():
    """Physical VMEM per TensorCore; conservative fallback if unknown."""
    try:
        info = pltpu.get_tpu_info()
        cap = int(getattr(info, "vmem_capacity_bytes", 0) or 0)
        if cap > 0:
            return cap
    except Exception:
        pass
    return 64 * 1024 * 1024  # v7x-sized fallback: safe on every generation


def _pick_block_b(B, Cp, Vp, Ep, vmem_budget_bytes, weight_buffers=1):
    """Pick TB = samples per grid step.

    VMEM model per step:
      ctx block (bf16, double buffered):     2 * TB*Cp*Vp * 2
      f32 intermediates (h, p, slack):       2 * TB*Cp*Vp * 4
      output block (f32, double buffered):   2 * TB*Ep * 4
      resident weights (bf16 mats + f32 rows): weight_buffers * (...)
    """
    weight_bytes = weight_buffers * ((Vp * Vp + Vp * Ep) * 2 + (Vp + Ep) * 4)
    per_sample = 2 * Cp * Vp * 2 + 2 * Cp * Vp * 4 + 2 * Ep * 4
    usable = max(vmem_budget_bytes - weight_bytes - (2 << 20), per_sample)
    tb_vmem = max(1, usable // per_sample)
    tb_rows = max(1, -(-2048 // Cp))           # cap fused M at ~2048 rows/step
    tb = int(max(1, min(B, tb_vmem, tb_rows)))
    if tb >= 8:
        tb -= tb % 8                           # sublane-aligned output block
        if -(-B // tb) < 2 and tb >= 16:       # prefer >=2 grid steps (v7x: 2 TCs)
            tb = max(8, (tb // 2) - ((tb // 2) % 8))
    else:
        tb = B if B < 8 else 8                 # keep the output block aligned
    return tb


def _code2vec_kernel(ctx_ref, w_fc_t_ref, a_row_ref, w2_t_ref, b2_ref, out_ref,
                     *, tb, c_pad, c_valid):
    vp = ctx_ref.shape[-1]

    # Dense layer fused over the whole batch block: one bf16 MXU matmul with
    # M = TB*Cp and f32 accumulation; tanh stays in f32.
    h2 = jnp.tanh(
        jnp.dot(ctx_ref[...], w_fc_t_ref[...],
                preferred_element_type=jnp.float32)
    )                                                        # [TB*Cp, Vp] f32
    h3 = h2.reshape(tb, c_pad, vp)                           # tile-aligned, free

    # Attention scores: VPU multiply + lane reduce over Vp -> [TB, Cp].
    s = jnp.sum(h3 * a_row_ref[...].reshape(1, 1, vp), axis=-1)

    # Mask padded contexts so the softmax matches the unpadded module.
    if c_valid != c_pad:
        idx = jax.lax.broadcasted_iota(jnp.int32, (tb, c_pad), 1)
        s = jnp.where(idx < c_valid, s, -1e30)

    # Softmax over contexts (lane reductions); reciprocal goes to the EUP slot.
    s = s - jnp.max(s, axis=-1, keepdims=True)
    p = jnp.exp(s)
    p = p * pl.reciprocal(jnp.sum(p, axis=-1, keepdims=True), approx=True)

    # Attention-weighted sum over contexts: VPU mul + sublane reduce
    # (a q=1 batched MXU matmul would waste >99% of the MXU rows).
    cv = jnp.sum(h3 * p.reshape(tb, c_pad, 1), axis=1)       # [TB, Vp] f32

    # Final linear layer: bf16 MXU matmul + f32 bias; lane-dense store.
    out_ref[...] = (
        jnp.dot(cv.astype(jnp.bfloat16), w2_t_ref[...],
                preferred_element_type=jnp.float32)
        + b2_ref[...]
    )


def code2vec_forward(ctx_embedded, w_fc, a, w2, b2, *, block_b=None):
    B, C, V = ctx_embedded.shape
    E = w2.shape[0]

    Vp = _round_up(V, 128)   # lane-dense K/N for MXU and VPU ops over h
    Ep = _round_up(E, 128)   # lane-dense output (unmasked vst)
    Cp = _round_up(C, 8)     # sublane-aligned contexts (free reshapes)

    # One-time HBM-side prep: pad, transpose, and cast the MXU operands.
    ctx = jnp.asarray(ctx_embedded, jnp.float32)
    ctx = jnp.pad(ctx, ((0, 0), (0, Cp - C), (0, Vp - V))).astype(jnp.bfloat16)
    w_fc_t = jnp.pad(jnp.asarray(w_fc, jnp.float32).T,
                     ((0, Vp - V), (0, Vp - V))).astype(jnp.bfloat16)
    a_row = jnp.pad(jnp.asarray(a, jnp.float32).reshape(1, V),
                    ((0, 0), (0, Vp - V)))                    # f32 (VPU operand)
    w2_t = jnp.pad(jnp.asarray(w2, jnp.float32).T,
                   ((0, Vp - V), (0, Ep - E))).astype(jnp.bfloat16)
    b2_row = jnp.pad(jnp.asarray(b2, jnp.float32).reshape(1, E),
                     ((0, 0), (0, Ep - E)))                   # f32

    # Per-generation VMEM budget (~96 MiB on v5e/v6e, ~48 MiB on v7x).
    vmem_budget = int(_vmem_capacity_bytes() * 3 // 4)
    TB = block_b if block_b is not None else _pick_block_b(
        B, Cp, Vp, Ep, vmem_budget, weight_buffers=1)
    TB = max(1, min(int(TB), B))

    Bp = _round_up(B, TB)
    if Bp != B:                       # pad awkward batch sizes instead of TB=1
        ctx = jnp.pad(ctx, ((0, Bp - B), (0, 0), (0, 0)))

    ctx2d = ctx.reshape(Bp * Cp, Vp)  # 2-D slab: tile-aligned blocking

    kernel = functools.partial(_code2vec_kernel, tb=TB, c_pad=Cp, c_valid=C)

    def build(weight_mode):
        def wspec(shape):
            if weight_mode is None:
                return pl.BlockSpec(shape, lambda b: (0, 0))
            return pl.BlockSpec(shape, lambda b: (0, 0),
                                pipeline_mode=weight_mode)

        return pl.pallas_call(
            kernel,
            out_shape=jax.ShapeDtypeStruct((Bp, Ep), jnp.float32),
            grid_spec=pltpu.PrefetchScalarGridSpec(
                num_scalar_prefetch=0,
                grid=(Bp // TB,),
                in_specs=[
                    pl.BlockSpec((TB * Cp, Vp), lambda b: (b, 0)),  # ctx block
                    wspec((Vp, Vp)),     # W_fc^T  (resident, bf16)
                    wspec((1, Vp)),      # a row   (resident, f32)
                    wspec((Vp, Ep)),     # W2^T    (resident, bf16)
                    wspec((1, Ep)),      # b2 row  (resident, f32)
                ],
                out_specs=pl.BlockSpec((TB, Ep), lambda b: (b, 0)),
            ),
            compiler_params=pltpu.CompilerParams(
                dimension_semantics=("parallel",),
                vmem_limit_bytes=vmem_budget,
            ),
        )

    try:
        # Grid-invariant weights only need a single pipeline buffer.
        out = build(pl.Buffered(1))(ctx2d, w_fc_t, a_row, w2_t, b2_row)
    except Exception:
        # Fallback if this Pallas version rejects single-buffered BlockSpecs.
        out = build(None)(ctx2d, w_fc_t, a_row, w2_t, b2_row)

    return out[:B, :E]


def reference_forward(ctx_embedded, w_fc, a, w2, b2):
    h = jnp.tanh(jnp.einsum("bcv,wv->bcw", ctx_embedded, w_fc))
    scores = jnp.einsum("bcv,vo->bco", h, a)                  # [B, C, 1]
    p = jax.nn.softmax(scores, axis=1)
    cv = jnp.sum(h * p, axis=1)                               # [B, V]
    return jnp.einsum("bv,ev->be", cv, w2) + b2[None, :]


def _make_inputs(key, B, C, E, nodes_dim, paths_dim):
    V = 3 * E
    keys = jax.random.split(key, 8)
    node_emb = jax.random.normal(keys[0], (nodes_dim + 2, E), jnp.float32) * 0.1
    path_emb = jax.random.normal(keys[1], (paths_dim + 1, E), jnp.float32) * 0.1
    path_emb = path_emb.at[0].set(0.0)                        # padding_idx=0
    w_fc = jax.random.normal(keys[2], (V, V), jnp.float32) * 0.05   # Linear(V,V,bias=False)
    a = jax.random.uniform(keys[3], (V, 1), jnp.float32)            # attention vector
    w2 = jax.random.normal(keys[4], (E, V), jnp.float32) * 0.05     # Linear(V,E) weight
    b2 = jax.random.normal(keys[5], (E,), jnp.float32) * 0.05       # Linear(V,E) bias
    starts = jax.random.randint(keys[6], (B, C), 0, nodes_dim, jnp.int32)
    ends = jax.random.randint(keys[7], (B, C), 0, nodes_dim, jnp.int32)
    paths = jax.random.randint(keys[6], (B, C), 0, paths_dim + 1, jnp.int32)
    # Glue (matches the PyTorch module): embedding lookups + concat(dim=2);
    # dropout is identity (eval mode); `masks` is unused by the forward pass.
    starts_e = node_emb[starts + 1]
    paths_e = path_emb[paths]
    ends_e = node_emb[ends + 1]
    ctx = jnp.concatenate((starts_e, paths_e, ends_e), axis=2).astype(jnp.float32)
    return ctx, w_fc, a, w2, b2


if __name__ == "__main__":
    key = jax.random.PRNGKey(0)
    k1, k2 = jax.random.split(key)

    # Config 1: contexts already sublane-aligned (C % 8 == 0).
    ctx, w_fc, a, w2, b2 = _make_inputs(k1, B=16, C=16, E=32,
                                        nodes_dim=40, paths_dim=50)
    out = jax.block_until_ready(code2vec_forward(ctx, w_fc, a, w2, b2))
    ref = reference_forward(ctx, w_fc, a, w2, b2)
    assert out.shape == ref.shape
    assert jnp.allclose(out, ref, rtol=1e-2, atol=1e-2), \
        "mismatch vs reference (aligned C)"

    # Config 2: C=12 exercises the context-padding + masked-softmax path
    # (stand-in for the real max_contexts=500 case, which is not 8-aligned).
    ctx2, w_fc2, a2, w22, b22 = _make_inputs(k2, B=8, C=12, E=32,
                                             nodes_dim=40, paths_dim=50)
    out2 = jax.block_until_ready(code2vec_forward(ctx2, w_fc2, a2, w22, b22))
    ref2 = reference_forward(ctx2, w_fc2, a2, w22, b22)
    assert jnp.allclose(out2, ref2, rtol=1e-2, atol=1e-2), \
        "mismatch vs reference (padded C)"

    print("KERNEL_OK")
</pallas_src>

<mosaic_0001>
module attributes {stable_mosaic.version = 11 : i64} {
  func.func @_code2vec_kernel(%arg0: i32, %arg1: memref<128x128xbf16, #tpu.memory_space<vmem>>, %arg2: memref<128x128xbf16, #tpu.memory_space<vmem>>, %arg3: memref<1x128xf32, #tpu.memory_space<vmem>>, %arg4: memref<128x128xbf16, #tpu.memory_space<vmem>>, %arg5: memref<1x128xf32, #tpu.memory_space<vmem>>, %arg6: memref<8x128xf32, #tpu.memory_space<vmem>>) attributes {dimension_semantics = [#tpu.dimension_semantics<parallel>], iteration_bounds = array<i64: 2>, scalar_prefetch = 0 : i64, scratch_operands = 0 : i64, tpu.core_type = #tpu.core_type<tc>, window_params = [{transform_indices = @transform_0, window_bounds = array<i64: 128, 128>}, {pipeline_mode = #tpu.pipeline_mode<synchronous>, transform_indices = @transform_1, window_bounds = array<i64: 128, 128>}, {pipeline_mode = #tpu.pipeline_mode<synchronous>, transform_indices = @transform_2, window_bounds = array<i64: 1, 128>}, {pipeline_mode = #tpu.pipeline_mode<synchronous>, transform_indices = @transform_3, window_bounds = array<i64: 128, 128>}, {pipeline_mode = #tpu.pipeline_mode<synchronous>, transform_indices = @transform_4, window_bounds = array<i64: 1, 128>}, {transform_indices = @transform_5, window_bounds = array<i64: 8, 128>}]} {
    %c0 = arith.constant 0 : index
    %c0_0 = arith.constant 0 : index
    %0 = vector.load %arg1[%c0, %c0_0] : memref<128x128xbf16, #tpu.memory_space<vmem>>, vector<128x128xbf16>
    %c0_1 = arith.constant 0 : index
    %c0_2 = arith.constant 0 : index
    %1 = vector.load %arg2[%c0_1, %c0_2] : memref<128x128xbf16, #tpu.memory_space<vmem>>, vector<128x128xbf16>
    %cst = arith.constant dense<0.000000e+00> : vector<128x128xf32>
    %2 = tpu.matmul %0, %1, %cst {dimension_numbers = #tpu.dot_dimension_numbers<[1], [0], [0], [1], [0, 0, 1, 1], [], []>} : vector<128x128xbf16>, vector<128x128xbf16>, vector<128x128xf32> -> vector<128x128xf32>
    %3 = math.tanh %2 : vector<128x128xf32>
    %4 = vector.shape_cast %3 : vector<128x128xf32> to vector<8x16x128xf32>
    %c0_3 = arith.constant 0 : index
    %c0_4 = arith.constant 0 : index
    %5 = vector.load %arg3[%c0_3, %c0_4] : memref<1x128xf32, #tpu.memory_space<vmem>>, vector<1x128xf32>
    %6 = vector.shape_cast %5 : vector<1x128xf32> to vector<1x1x128xf32>
    %7 = vector.broadcast %6 : vector<1x1x128xf32> to vector<8x16x128xf32>
    %8 = arith.mulf %4, %7 : vector<8x16x128xf32>
    %cst_5 = arith.constant dense<0.000000e+00> : vector<8x16xf32>
    %9 = vector.multi_reduction <add>, %8, %cst_5 [2] : vector<8x16x128xf32> to vector<8x16xf32>
    %cst_6 = arith.constant dense<0xFF800000> : vector<8xf32>
    %10 = vector.multi_reduction <maximumf>, %9, %cst_6 [1] : vector<8x16xf32> to vector<8xf32>
    %11 = vector.shape_cast %10 : vector<8xf32> to vector<8x1xf32>
    %12 = vector.broadcast %11 : vector<8x1xf32> to vector<8x16xf32>
    %13 = arith.subf %9, %12 : vector<8x16xf32>
    %14 = math.exp %13 : vector<8x16xf32>
    %cst_7 = arith.constant dense<0.000000e+00> : vector<8xf32>
    %15 = vector.multi_reduction <add>, %14, %cst_7 [1] : vector<8x16xf32> to vector<8xf32>
    %16 = vector.shape_cast %15 : vector<8xf32> to vector<8x1xf32>
    %17 = tpu.reciprocal %16 {approx = true} : vector<8x1xf32> -> vector<8x1xf32>
    %18 = vector.broadcast %17 : vector<8x1xf32> to vector<8x16xf32>
    %19 = arith.mulf %14, %18 : vector<8x16xf32>
    %20 = vector.shape_cast %19 : vector<8x16xf32> to vector<8x16x1xf32>
    %21 = vector.broadcast %20 : vector<8x16x1xf32> to vector<8x16x128xf32>
    %22 = arith.mulf %4, %21 : vector<8x16x128xf32>
    %cst_8 = arith.constant dense<0.000000e+00> : vector<8x128xf32>
    %23 = vector.multi_reduction <add>, %22, %cst_8 [1] : vector<8x16x128xf32> to vector<8x128xf32>
    %24 = arith.truncf %23 : vector<8x128xf32> to vector<8x128xbf16>
    %c0_9 = arith.constant 0 : index
    %c0_10 = arith.constant 0 : index
    %25 = vector.load %arg4[%c0_9, %c0_10] : memref<128x128xbf16, #tpu.memory_space<vmem>>, vector<128x128xbf16>
    %cst_11 = arith.constant dense<0.000000e+00> : vector<8x128xf32>
    %26 = tpu.matmul %24, %25, %cst_11 {dimension_numbers = #tpu.dot_dimension_numbers<[1], [0], [0], [1], [0, 0, 1, 1], [], []>} : vector<8x128xbf16>, vector<128x128xbf16>, vector<8x128xf32> -> vector<8x128xf32>
    %c0_12 = arith.constant 0 : index
    %c0_13 = arith.constant 0 : index
    %27 = vector.load %arg5[%c0_12, %c0_13] : memref<1x128xf32, #tpu.memory_space<vmem>>, vector<1x128xf32>
    %28 = vector.broadcast %27 : vector<1x128xf32> to vector<8x128xf32>
    %29 = arith.addf %26, %28 : vector<8x128xf32>
    %c0_14 = arith.constant 0 : index
    %c0_15 = arith.constant 0 : index
    %30 = vector.load %arg6[%c0_14, %c0_15] : memref<8x128xf32, #tpu.memory_space<vmem>>, vector<8x128xf32>
    tpu.vector_store %arg6[%c0_14, %c0_15], %29 {strides = array<i32>} : memref<8x128xf32, #tpu.memory_space<vmem>>, vector<8x128xf32>,
    return
  }
  func.func @transform_0(%arg0: i32) -> (i32, i32) {
    %c0_i32 = arith.constant 0 : i32
    %c0_i32_0 = arith.constant 0 : i32
    return %arg0, %c0_i32 : i32, i32
  }
  func.func @transform_1(%arg0: i32) -> (i32, i32) {
    %c0_i32 = arith.constant 0 : i32
    %c0_i32_0 = arith.constant 0 : i32
    %c0_i32_1 = arith.constant 0 : i32
    return %c0_i32, %c0_i32_0 : i32, i32
  }
  func.func @transform_2(%arg0: i32) -> (i32, i32) {
    %c0_i32 = arith.constant 0 : i32
    %c0_i32_0 = arith.constant 0 : i32
    %c0_i32_1 = arith.constant 0 : i32
    return %c0_i32, %c0_i32_0 : i32, i32
  }
  func.func @transform_3(%arg0: i32) -> (i32, i32) {
    %c0_i32 = arith.constant 0 : i32
    %c0_i32_0 = arith.constant 0 : i32
    %c0_i32_1 = arith.constant 0 : i32
    return %c0_i32, %c0_i32_0 : i32, i32
  }
  func.func @transform_4(%arg0: i32) -> (i32, i32) {
    %c0_i32 = arith.constant 0 : i32
    %c0_i32_0 = arith.constant 0 : i32
    %c0_i32_1 = arith.constant 0 : i32
    return %c0_i32, %c0_i32_0 : i32, i32
  }
  func.func @transform_5(%arg0: i32) -> (i32, i32) {
    %c0_i32 = arith.constant 0 : i32
    %c0_i32_0 = arith.constant 0 : i32
    return %arg0, %c0_i32 : i32, i32
  }
}

module attributes {stable_mosaic.version = 11 : i64} {
  func.func @_code2vec_kernel(%arg0: i32, %arg1: memref<128x128xbf16, #tpu.memory_space<vmem>>, %arg2: memref<128x128xbf16, #tpu.memory_space<vmem>>, %arg3: memref<1x128xf32, #tpu.memory_space<vmem>>, %arg4: memref<128x128xbf16, #tpu.memory_space<vmem>>, %arg5: memref<1x128xf32, #tpu.memory_space<vmem>>, %arg6: memref<8x128xf32, #tpu.memory_space<vmem>>) attributes {dimension_semantics = [#tpu.dimension_semantics<parallel>], iteration_bounds = array<i64: 2>, scalar_prefetch = 0 : i64, scratch_operands = 0 : i64, tpu.core_type = #tpu.core_type<tc>, window_params = [{transform_indices = @transform_0, window_bounds = array<i64: 128, 128>}, {pipeline_mode = #tpu.pipeline_mode<synchronous>, transform_indices = @transform_1, window_bounds = array<i64: 128, 128>}, {pipeline_mode = #tpu.pipeline_mode<synchronous>, transform_indices = @transform_2, window_bounds = array<i64: 1, 128>}, {pipeline_mode = #tpu.pipeline_mode<synchronous>, transform_indices = @transform_3, window_bounds = array<i64: 128, 128>}, {pipeline_mode = #tpu.pipeline_mode<synchronous>, transform_indices = @transform_4, window_bounds = array<i64: 1, 128>}, {transform_indices = @transform_5, window_bounds = array<i64: 8, 128>}]} {
    %c0 = arith.constant 0 : index
    %c0_0 = arith.constant 0 : index
    %0 = vector.load %arg1[%c0, %c0_0] : memref<128x128xbf16, #tpu.memory_space<vmem>>, vector<128x128xbf16>
    %c0_1 = arith.constant 0 : index
    %c0_2 = arith.constant 0 : index
    %1 = vector.load %arg2[%c0_1, %c0_2] : memref<128x128xbf16, #tpu.memory_space<vmem>>, vector<128x128xbf16>
    %cst = arith.constant dense<0.000000e+00> : vector<128x128xf32>
    %2 = tpu.matmul %0, %1, %cst {dimension_numbers = #tpu.dot_dimension_numbers<[1], [0], [0], [1], [0, 0, 1, 1], [], []>} : vector<128x128xbf16>, vector<128x128xbf16>, vector<128x128xf32> -> vector<128x128xf32>
    %3 = math.tanh %2 : vector<128x128xf32>
    %4 = vector.shape_cast %3 : vector<128x128xf32> to vector<8x16x128xf32>
    %c0_3 = arith.constant 0 : index
    %c0_4 = arith.constant 0 : index
    %5 = vector.load %arg3[%c0_3, %c0_4] : memref<1x128xf32, #tpu.memory_space<vmem>>, vector<1x128xf32>
    %6 = vector.shape_cast %5 : vector<1x128xf32> to vector<1x1x128xf32>
    %7 = vector.broadcast %6 : vector<1x1x128xf32> to vector<8x16x128xf32>
    %8 = arith.mulf %4, %7 : vector<8x16x128xf32>
    %cst_5 = arith.constant dense<0.000000e+00> : vector<8x16xf32>
    %9 = vector.multi_reduction <add>, %8, %cst_5 [2] : vector<8x16x128xf32> to vector<8x16xf32>
    %cst_6 = arith.constant dense<0xFF800000> : vector<8xf32>
    %10 = vector.multi_reduction <maximumf>, %9, %cst_6 [1] : vector<8x16xf32> to vector<8xf32>
    %11 = vector.shape_cast %10 : vector<8xf32> to vector<8x1xf32>
    %12 = vector.broadcast %11 : vector<8x1xf32> to vector<8x16xf32>
    %13 = arith.subf %9, %12 : vector<8x16xf32>
    %14 = math.exp %13 : vector<8x16xf32>
    %cst_7 = arith.constant dense<0.000000e+00> : vector<8xf32>
    %15 = vector.multi_reduction <add>, %14, %cst_7 [1] : vector<8x16xf32> to vector<8xf32>
    %16 = vector.shape_cast %15 : vector<8xf32> to vector<8x1xf32>
    %17 = tpu.reciprocal %16 {approx = true} : vector<8x1xf32> -> vector<8x1xf32>
    %18 = vector.broadcast %17 : vector<8x1xf32> to vector<8x16xf32>
    %19 = arith.mulf %14, %18 : vector<8x16xf32>
    %20 = vector.shape_cast %19 : vector<8x16xf32> to vector<8x16x1xf32>
    %21 = vector.broadcast %20 : vector<8x16x1xf32> to vector<8x16x128xf32>
    %22 = arith.mulf %4, %21 : vector<8x16x128xf32>
    %cst_8 = arith.constant dense<0.000000e+00> : vector<8x128xf32>
    %23 = vector.multi_reduction <add>, %22, %cst_8 [1] : vector<8x16x128xf32> to vector<8x128xf32>
    %24 = arith.truncf %23 : vector<8x128xf32> to vector<8x128xbf16>
    %c0_9 = arith.constant 0 : index
    %c0_10 = arith.constant 0 : index
    %25 = vector.load %arg4[%c0_9, %c0_10] : memref<128x128xbf16, #tpu.memory_space<vmem>>, vector<128x128xbf16>
    %cst_11 = arith.constant dense<0.000000e+00> : vector<8x128xf32>
    %26 = tpu.matmul %24, %25, %cst_11 {dimension_numbers = #tpu.dot_dimension_numbers<[1], [0], [0], [1], [0, 0, 1, 1], [], []>} : vector<8x128xbf16>, vector<128x128xbf16>, vector<8x128xf32> -> vector<8x128xf32>
    %c0_12 = arith.constant 0 : index
    %c0_13 = arith.constant 0 : index
    %27 = vector.load %arg5[%c0_12, %c0_13] : memref<1x128xf32, #tpu.memory_space<vmem>>, vector<1x128xf32>
    %28 = vector.broadcast %27 : vector<1x128xf32> to vector<8x128xf32>
    %29 = arith.addf %26, %28 : vector<8x128xf32>
    %c0_14 = arith.constant 0 : index
    %c0_15 = arith.constant 0 : index
    %30 = vector.load %arg6[%c0_14, %c0_15] : memref<8x128xf32, #tpu.memory_space<vmem>>, vector<8x128xf32>
    tpu.vector_store %arg6[%c0_14, %c0_15], %29 {strides = array<i32>} : memref<8x128xf32, #tpu.memory_space<vmem>>, vector<8x128xf32>,
    return
  }
  func.func @transform_0(%arg0: i32) -> (i32, i32) {
    %c0_i32 = arith.constant 0 : i32
    %c0_i32_0 = arith.constant 0 : i32
    return %arg0, %c0_i32 : i32, i32
  }
  func.func @transform_1(%arg0: i32) -> (i32, i32) {
    %c0_i32 = arith.constant 0 : i32
    %c0_i32_0 = arith.constant 0 : i32
    %c0_i32_1 = arith.constant 0 : i32
    return %c0_i32, %c0_i32_0 : i32, i32
  }
  func.func @transform_2(%arg0: i32) -> (i32, i32) {
    %c0_i32 = arith.constant 0 : i32
    %c0_i32_0 = arith.constant 0 : i32
    %c0_i32_1 = arith.constant 0 : i32
    return %c0_i32, %c0_i32_0 : i32, i32
  }
  func.func @transform_3(%arg0: i32) -> (i32, i32) {
    %c0_i32 = arith.constant 0 : i32
    %c0_i32_0 = arith.constant 0 : i32
    %c0_i32_1 = arith.constant 0 : i32
    return %c0_i32, %c0_i32_0 : i32, i32
  }
  func.func @transform_4(%arg0: i32) -> (i32, i32) {
    %c0_i32 = arith.constant 0 : i32
    %c0_i32_0 = arith.constant 0 : i32
    %c0_i32_1 = arith.constant 0 : i32
    return %c0_i32, %c0_i32_0 : i32, i32
  }
  func.func @transform_5(%arg0: i32) -> (i32, i32) {
    %c0_i32 = arith.constant 0 : i32
    %c0_i32_0 = arith.constant 0 : i32
    return %arg0, %c0_i32 : i32, i32
  }
}

</mosaic_0001>

<llo_original>
// kernel: tpu_custom_call.1
$region0: #{tpu_custom_call.1}
  #allocation0 [shape = 'u32[]', space=smem, size = 0x4, offset = 0x4, fixed_abs, tag = 'smem constant byte address 0x4 - core index']
  #allocation1 [shape = 'u32[144,128]{1,0:T(1,128)}', space=vmem, size = 0x12000, scoped, tag = 'internal scratch']
  %s0 = inlined_call_operand.hbm [shape: bf16[256,128], index: 0, kind: input, shape index: {}]
  %s1 = inlined_call_operand.hbm [shape: bf16[128,128], index: 1, kind: input, shape index: {}]
  %s2 = inlined_call_operand.vmem [shape: f32[1,128], index: 2, kind: input, shape index: {}]
  %s3 = inlined_call_operand.hbm [shape: bf16[128,128], index: 3, kind: input, shape index: {}]
  %s4 = inlined_call_operand.vmem [shape: f32[1,128], index: 4, kind: input, shape index: {}]
  %s5 = inlined_call_operand.hbm [shape: f32[16,128], index: 5, kind: output, shape index: {}]
  %s6 = sld [smem:[#allocation0]]
  $region65: #{tpu_custom_call.1} parent=0
    _
  %s8 = ssub.s32 1, %s6
  %s9 = scalar_select 0, %s8, %s6
  $region1: #{tpu_custom_call.1} parent=0
    #allocation2 [shape = 'u8[65536]{0}', space=vmem, size = 0x10000, scoped, tag = 'input window, operand 0']
    #allocation3 [shape = 's32[2]{0}', space=sflag, size = 0x8, scoped, tag = 'scoped memory for tpu_custom_call.1']
    #allocation4 [shape = 's32[2]{0}', space=sflag, size = 0x8, scoped, tag = 'scoped memory for tpu_custom_call.1']
    #allocation5 [shape = 'u8[32768]{0}', space=vmem, size = 0x8000, scoped, tag = 'input window, operand 1, single buffered']
    #allocation6 [shape = 's32[1]{0}', space=sflag, size = 0x4, scoped, tag = 'scoped memory for tpu_custom_call.1']
    #allocation7 [shape = 'u8[32768]{0}', space=vmem, size = 0x8000, scoped, tag = 'input window, operand 3, single buffered']
    #allocation8 [shape = 'u8[8192]{0}', space=vmem, size = 0x2000, scoped, tag = 'output window, operand 0']
    %10 = vsyncpa [#allocation3], 0
    %s11 = scalar_lea.sflag [#allocation3], 1
    %12 = vsyncpa %s11, 0
    %13 = vsyncpa [#allocation6], 0
    %14 = vsyncpa [#allocation4], 0
    %s15 = scalar_lea.sflag [#allocation4], 1
    %16 = vsyncpa %s15, 0
    loop: start=0, step=1, limit=4
    $region2: #{tpu_custom_call.1} parent=1 // loop_pre_header
      _
    $region3: #{tpu_custom_call.1} parent=1 // loop_header
      %s18 = sphi 0, %s22
      %p19 = scmp.ge.s32.totalorder %s18, 4
      %s28 = sphi 0, %s30
      %s31 = sphi 0, %s28
      %s32 = sphi 0, %s31
      %s48 = sphi 0, %s32
      %s52 = sphi 0, %s52
      %s54 = sphi 0, %s52
      %s55 = sphi 0, %s54
      %s69 = sphi 0, %s55
      %s73 = sphi 0, %s73
      %s75 = sphi 0, %s73
      %s76 = sphi 0, %s75
      %s90 = sphi 0, %s76
      %s94 = sphi 0, %s94
      %s96 = sphi 0, %s94
      %s97 = sphi 0, %s96
      %s111 = sphi 0, %s97
      %s115 = sphi 0, %s115
      %s117 = sphi 0, %s115
      %s118 = sphi 0, %s117
      %s132 = sphi 0, %s118
      %s138 = sphi 0, %s140
      %s141 = sphi 0, %s138
      %s142 = sphi 0, %s141
      %s158 = sphi 0, %s142
    $region4: #{tpu_custom_call.1} parent=1 // loop_header_branch
      %21 = sbr.rel (%p19) target = $region8
    $region5: #{tpu_custom_call.1} parent=1 // loop_body
      %s23 = ssub.s32 %s18, 1
      %s24 = ssub.s32 %s18, 2
      %s25 = sadd.s32 %s18, 1
      %s26 = ssub.s32 %s18, %s25
      %p27 = scmp.eq.s32.totalorder %s26, 0
      %s29 = sadd.s32 %s28, 1
      %s30 = scalar_select %p27, %s28, %s29
      %p33 = pneg %p27
      %p34 = scmp.eq.s32.totalorder %s18, 1
      %p35 = por %p33, %p34
      %p36 = scmp.ne.s32.totalorder %s28, %s31
      %p37 = scmp.eq.s32.totalorder %s18, 0
      %p38 = por %p36, %p37
      %p39 = scmp.ne.s32.totalorder %s28, %s31
      %p40 = scmp.eq.s32.totalorder %s23, 1
      %p41 = por %p39, %p40
      %p42 = scmp.ne.s32.totalorder %s31, %s32
      %p43 = scmp.eq.s32.totalorder %s23, 0
      %p44 = por %p42, %p43
      %p45 = scmp.ne.s32.totalorder %s31, %s32
      %p46 = scmp.eq.s32.totalorder %s24, 1
      %p47 = por %p45, %p46
      %p49 = scmp.ne.s32.totalorder %s32, %s48
      %p50 = scmp.eq.s32.totalorder %s24, 0
      %p51 = por %p49, %p50
      %s53 = sadd.s32 %s52, 1
      %p56 = scmp.eq.s32.totalorder %s18, 1
      %p57 = scmp.ne.s32.totalorder %s52, %s54
      %p58 = scmp.eq.s32.totalorder %s18, 0
      %p59 = por %p57, %p58
      %p60 = scmp.ne.s32.totalorder %s52, %s54
      %p61 = scmp.eq.s32.totalorder %s23, 1
      %p62 = por %p60, %p61
      %p63 = scmp.ne.s32.totalorder %s54, %s55
      %p64 = scmp.eq.s32.totalorder %s23, 0
      %p65 = por %p63, %p64
      %p66 = scmp.ne.s32.totalorder %s54, %s55
      %p67 = scmp.eq.s32.totalorder %s24, 1
      %p68 = por %p66, %p67
      %p70 = scmp.ne.s32.totalorder %s55, %s69
      %p71 = scmp.eq.s32.totalorder %s24, 0
      %p72 = por %p70, %p71
      %s74 = sadd.s32 %s73, 1
      %p77 = scmp.eq.s32.totalorder %s18, 1
      %p78 = scmp.ne.s32.totalorder %s73, %s75
      %p79 = scmp.eq.s32.totalorder %s18, 0
      %p80 = por %p78, %p79
      %p81 = scmp.ne.s32.totalorder %s73, %s75
      %p82 = scmp.eq.s32.totalorder %s23, 1
      %p83 = por %p81, %p82
      %p84 = scmp.ne.s32.totalorder %s75, %s76
      %p85 = scmp.eq.s32.totalorder %s23, 0
      %p86 = por %p84, %p85
      %p87 = scmp.ne.s32.totalorder %s75, %s76
      %p88 = scmp.eq.s32.totalorder %s24, 1
      %p89 = por %p87, %p88
      %p91 = scmp.ne.s32.totalorder %s76, %s90
      %p92 = scmp.eq.s32.totalorder %s24, 0
      %p93 = por %p91, %p92
      %s95 = sadd.s32 %s94, 1
      %p98 = scmp.eq.s32.totalorder %s18, 1
      %p99 = scmp.ne.s32.totalorder %s94, %s96
      %p100 = scmp.eq.s32.totalorder %s18, 0
      %p101 = por %p99, %p100
      %p102 = scmp.ne.s32.totalorder %s94, %s96
      %p103 = scmp.eq.s32.totalorder %s23, 1
      %p104 = por %p102, %p103
      %p105 = scmp.ne.s32.totalorder %s96, %s97
      %p106 = scmp.eq.s32.totalorder %s23, 0
      %p107 = por %p105, %p106
      %p108 = scmp.ne.s32.totalorder %s96, %s97
      %p109 = scmp.eq.s32.totalorder %s24, 1
      %p110 = por %p108, %p109
      %p112 = scmp.ne.s32.totalorder %s97, %s111
      %p113 = scmp.eq.s32.totalorder %s24, 0
      %p114 = por %p112, %p113
      %s116 = sadd.s32 %s115, 1
      %p119 = scmp.eq.s32.totalorder %s18, 1
      %p120 = scmp.ne.s32.totalorder %s115, %s117
      %p121 = scmp.eq.s32.totalorder %s18, 0
      %p122 = por %p120, %p121
      %p123 = scmp.ne.s32.totalorder %s115, %s117
      %p124 = scmp.eq.s32.totalorder %s23, 1
      %p125 = por %p123, %p124
      %p126 = scmp.ne.s32.totalorder %s117, %s118
      %p127 = scmp.eq.s32.totalorder %s23, 0
      %p128 = por %p126, %p127
      %p129 = scmp.ne.s32.totalorder %s117, %s118
      %p130 = scmp.eq.s32.totalorder %s24, 1
      %p131 = por %p129, %p130
      %p133 = scmp.ne.s32.totalorder %s118, %s132
      %p134 = scmp.eq.s32.totalorder %s24, 0
      %p135 = por %p133, %p134
      %s136 = ssub.s32 %s18, %s25
      %p137 = scmp.eq.s32.totalorder %s136, 0
      %s139 = sadd.s32 %s138, 1
      %s140 = scalar_select %p137, %s138, %s139
      %p143 = pneg %p137
      %p144 = scmp.eq.s32.totalorder %s18, 1
      %p145 = por %p143, %p144
      %p146 = scmp.ne.s32.totalorder %s138, %s141
      %p147 = scmp.eq.s32.totalorder %s18, 0
      %p148 = por %p146, %p147
      %p149 = scmp.ne.s32.totalorder %s138, %s141
      %p150 = scmp.eq.s32.totalorder %s23, 1
      %p151 = por %p149, %p150
      %p152 = scmp.ne.s32.totalorder %s141, %s142
      %p153 = scmp.eq.s32.totalorder %s23, 0
      %p154 = por %p152, %p153
      %p155 = scmp.ne.s32.totalorder %s141, %s142
      %p156 = scmp.eq.s32.totalorder %s24, 1
      %p157 = por %p155, %p156
      %p159 = scmp.ne.s32.totalorder %s142, %s158
      %p160 = scmp.eq.s32.totalorder %s24, 0
      %p161 = por %p159, %p160
      %p162 = scmp.le.s32.totalorder 1, %s18
      %p163 = scmp.lt.s32.totalorder %s18, 3
      %p164 = pnand %p162, %p163
      %p165 = pneg %p164
      // Predicated region
      $region9: #{tpu_custom_call.1} parent=5 // pred_check
        _
      $region10: #{tpu_custom_call.1} parent=5 // pred_check_branch
        %167 = sbr.rel (%p164) target = $region12
      $region11: #{tpu_custom_call.1} parent=5 // pred_region
        %s168 = ssub.s32 %s18, 1
        // Predicated region
        $region13: #{tpu_custom_call.1} parent=11 // pred_check
          %p169 = pneg %p65
        $region14: #{tpu_custom_call.1} parent=11 // pred_check_branch
          %171 = sbr.rel (%p169) target = $region16
        $region15: #{tpu_custom_call.1} parent=11 // pred_region
          %s173 = ssub.s32 1024, 1024
          %174 = vsyncadd [#allocation6], %s173
          %s175 = sshll.u32 [#allocation5], 4
          %s176 = int_to_ptr.vmem [resolvable:$true] %s175
          %181 = dma.hbm_to_vmem [thread:$0]  %s1, 1024, %s176, [#allocation6], 64, 64, 4
        $region16: #{tpu_custom_call.1} parent=11 // pred_fallthru
          _
        // Predicated region
        $region17: #{tpu_custom_call.1} parent=11 // pred_check
          %p182 = pneg %p86
        $region18: #{tpu_custom_call.1} parent=11 // pred_check_branch
          %184 = sbr.rel (%p182) target = $region20
        $region19: #{tpu_custom_call.1} parent=11 // pred_region
          _
        $region20: #{tpu_custom_call.1} parent=11 // pred_fallthru
          _
        // Predicated region
        $region21: #{tpu_custom_call.1} parent=11 // pred_check
          %p185 = pneg %p107
        $region22: #{tpu_custom_call.1} parent=11 // pred_check_branch
          %187 = sbr.rel (%p185) target = $region24
        $region23: #{tpu_custom_call.1} parent=11 // pred_region
          %s189 = ssub.s32 1024, 1024
          %190 = vsyncadd [#allocation6], %s189
          %s191 = sshll.u32 [#allocation7], 4
          %s192 = int_to_ptr.vmem [resolvable:$true] %s191
          %197 = dma.hbm_to_vmem [thread:$0]  %s3, 1024, %s192, [#allocation6], 64, 64, 4
        $region24: #{tpu_custom_call.1} parent=11 // pred_fallthru
          _
        // Predicated region
        $region25: #{tpu_custom_call.1} parent=11 // pred_check
          %p198 = pneg %p128
        $region26: #{tpu_custom_call.1} parent=11 // pred_check_branch
          %200 = sbr.rel (%p198) target = $region28
        $region27: #{tpu_custom_call.1} parent=11 // pred_region
          _
        $region28: #{tpu_custom_call.1} parent=11 // pred_fallthru
          _
      $region12: #{tpu_custom_call.1} parent=5 // pred_fallthru
        _
      %p201 = scmp.lt.s32.totalorder %s18, 2
      // Predicated region
      $region29: #{tpu_custom_call.1} parent=5 // pred_check
        %p202 = pneg %p201
      $region30: #{tpu_custom_call.1} parent=5 // pred_check_branch
        %204 = sbr.rel (%p202) target = $region32
      $region31: #{tpu_custom_call.1} parent=5 // pred_region
        // Predicated region
        $region33: #{tpu_custom_call.1} parent=31 // pred_check
          %p205 = pneg %p38
        $region34: #{tpu_custom_call.1} parent=31 // pred_check_branch
          %207 = sbr.rel (%p205) target = $region36
        $region35: #{tpu_custom_call.1} parent=31 // pred_region
          %s208 = sand.u32 %s28, 1
          %s209 = scalar_lea.sflag [#allocation3], %s208
          %s210 = sand.u32 %s28, 1
          %s211 = smul.addr %s210, 64
          %s212 = scalar_lea.vmem [#allocation2], %s211
          %s213 = smul.u32 16, %s18
          %s215 = ssub.s32 1024, 1024
          %216 = vsyncadd %s209, %s215
          %s217 = smul.addr %s213, 64
          %s218 = scalar_lea.hbm %s0, %s217
          %s219 = sshll.u32 %s212, 4
          %s220 = int_to_ptr.vmem [resolvable:$true] %s219
          %225 = dma.hbm_to_vmem [thread:$0]  %s218, 1024, %s220, %s209, 64, 64, 4
        $region36: #{tpu_custom_call.1} parent=31 // pred_fallthru
          _
      $region32: #{tpu_custom_call.1} parent=5 // pred_fallthru
        _
      %p226 = scmp.le.s32.totalorder 1, %s18
      %p227 = scmp.lt.s32.totalorder %s18, 3
      %p228 = pnand %p226, %p227
      %p229 = pneg %p228
      // Predicated region
      $region37: #{tpu_custom_call.1} parent=5 // pred_check
        _
      $region38: #{tpu_custom_call.1} parent=5 // pred_check_branch
        %231 = sbr.rel (%p228) target = $region40
      $region39: #{tpu_custom_call.1} parent=5 // pred_region
        %s232 = ssub.s32 %s18, 1
        %s233 = sand.u32 %s31, 1
        %s234 = scalar_lea.sflag [#allocation3], %s233
        %s235 = sand.u32 %s31, 1
        %s236 = smul.addr %s235, 64
        %s237 = scalar_lea.vmem [#allocation2], %s236
        // Predicated region
        $region41: #{tpu_custom_call.1} parent=39 // pred_check
          %p238 = pneg %p44
        $region42: #{tpu_custom_call.1} parent=39 // pred_check_branch
          %240 = sbr.rel (%p238) target = $region44
        $region43: #{tpu_custom_call.1} parent=39 // pred_region
          %241 = dma.done %s234, 1024
        $region44: #{tpu_custom_call.1} parent=39 // pred_fallthru
          _
        // Predicated region
        $region45: #{tpu_custom_call.1} parent=39 // pred_check
          %p242 = pneg %p65
        $region46: #{tpu_custom_call.1} parent=39 // pred_check_branch
          %244 = sbr.rel (%p242) target = $region48
        $region47: #{tpu_custom_call.1} parent=39 // pred_region
          %245 = dma.done [#allocation6], 1024
        $region48: #{tpu_custom_call.1} parent=39 // pred_fallthru
          _
        // Predicated region
        $region49: #{tpu_custom_call.1} parent=39 // pred_check
          %p246 = pneg %p107
        $region50: #{tpu_custom_call.1} parent=39 // pred_check_branch
          %248 = sbr.rel (%p246) target = $region52
        $region51: #{tpu_custom_call.1} parent=39 // pred_region
          %249 = dma.done [#allocation6], 1024
        $region52: #{tpu_custom_call.1} parent=39 // pred_fallthru
          _
        %s250 = sand.u32 %s31, 1
        %s251 = scalar_lea.sflag [#allocation3], %s250
        %s252 = sand.u32 %s31, 1
        %s253 = smul.addr %s252, 64
        %s254 = scalar_lea.vmem [#allocation2], %s253
        %p255 = pneg %p44
        %p256 = pneg %p41
        %p257 = pneg %p65
        %p258 = pneg %p62
        %p259 = pneg %p86
        %p260 = pneg %p83
        %p261 = pneg %p107
        %p262 = pneg %p104
        %p263 = pneg %p128
        %p264 = pneg %p125
        %p265 = pneg %p154
        %p266 = pneg %p151
        %s267 = sand.u32 %s141, 1
        %s268 = scalar_lea.sflag [#allocation4], %s267
        %s269 = sand.u32 %s141, 1
        %s270 = smul.addr %s269, 8
        %s271 = scalar_lea.vmem [#allocation8], %s270
        %s272 = smul.u32 16, %s23
        %v274 = vld [vmem:[%s237] sm:$0xf]
        %v275 = vld [vmem:[%s237 + $0x4] sm:$0xf]
        %v276 = vld [vmem:[%s237 + $0x8] sm:$0xf]
        %v277 = vld [vmem:[%s237 + $0xc] sm:$0xf]
        %v278 = vld [vmem:[%s237 + $0x10] sm:$0xf]
        %v279 = vld [vmem:[%s237 + $0x14] sm:$0xf]
        %v280 = vld [vmem:[%s237 + $0x18] sm:$0xf]
        %v281 = vld [vmem:[%s237 + $0x1c] sm:$0xf]
        %v282 = vld [vmem:[%s237 + $0x20] sm:$0xf]
        %v283 = vld [vmem:[%s237 + $0x24] sm:$0xf]
        %v284 = vld [vmem:[%s237 + $0x28] sm:$0xf]
        %v285 = vld [vmem:[%s237 + $0x2c] sm:$0xf]
        %v286 = vld [vmem:[%s237 + $0x30] sm:$0xf]
        %v287 = vld [vmem:[%s237 + $0x34] sm:$0xf]
        %v288 = vld [vmem:[%s237 + $0x38] sm:$0xf]
        %v289 = vld [vmem:[%s237 + $0x3c] sm:$0xf]
        %v290 = vld [vmem:[#allocation5] sm:$0xf]
        %v291 = vld [vmem:[#allocation5 + $0x4] sm:$0xf]
        %v292 = vld [vmem:[#allocation5 + $0x8] sm:$0xf]
        %v293 = vld [vmem:[#allocation5 + $0xc] sm:$0xf]
        %v294 = vld [vmem:[#allocation5 + $0x10] sm:$0xf]
        %v295 = vld [vmem:[#allocation5 + $0x14] sm:$0xf]
        %v296 = vld [vmem:[#allocation5 + $0x18] sm:$0xf]
        %v297 = vld [vmem:[#allocation5 + $0x1c] sm:$0xf]
        %v298 = vld [vmem:[#allocation5 + $0x20] sm:$0xf]
        %v299 = vld [vmem:[#allocation5 + $0x24] sm:$0xf]
        %v300 = vld [vmem:[#allocation5 + $0x28] sm:$0xf]
        %v301 = vld [vmem:[#allocation5 + $0x2c] sm:$0xf]
        %v302 = vld [vmem:[#allocation5 + $0x30] sm:$0xf]
        %v303 = vld [vmem:[#allocation5 + $0x34] sm:$0xf]
        %v304 = vld [vmem:[#allocation5 + $0x38] sm:$0xf]
        %v305 = vld [vmem:[#allocation5 + $0x3c] sm:$0xf]
        %v322 = vunpack.c.l.b16 %v274
        %v323 = vunpack.c.l.b16 %v275
        %v324 = vunpack.c.l.b16 %v276
        %v325 = vunpack.c.l.b16 %v277
        %v326 = vunpack.c.l.b16 %v278
        %v327 = vunpack.c.l.b16 %v279
        %v328 = vunpack.c.l.b16 %v280
        %v329 = vunpack.c.l.b16 %v281
        %v330 = vunpack.c.l.b16 %v282
        %v331 = vunpack.c.l.b16 %v283
        %v332 = vunpack.c.l.b16 %v284
        %v333 = vunpack.c.l.b16 %v285
        %v334 = vunpack.c.l.b16 %v286
        %v335 = vunpack.c.l.b16 %v287
        %v336 = vunpack.c.l.b16 %v288
        %v337 = vunpack.c.l.b16 %v289
        %v338 = vpack.c.b16 %v323, %v322
        %v339 = vpack.c.b16 %v325, %v324
        %v340 = vpack.c.b16 %v327, %v326
        %v341 = vpack.c.b16 %v329, %v328
        %v342 = vpack.c.b16 %v331, %v330
        %v343 = vpack.c.b16 %v333, %v332
        %v344 = vpack.c.b16 %v335, %v334
        %v345 = vpack.c.b16 %v337, %v336
        %v370 = vunpack.c.l.b16 %v290
        %v371 = vunpack.c.l.b16 %v291
        %v372 = vunpack.c.l.b16 %v292
        %v373 = vunpack.c.l.b16 %v293
        %v374 = vunpack.c.l.b16 %v294
        %v375 = vunpack.c.l.b16 %v295
        %v376 = vunpack.c.l.b16 %v296
        %v377 = vunpack.c.l.b16 %v297
        %v378 = vunpack.c.l.b16 %v298
        %v379 = vunpack.c.l.b16 %v299
        %v380 = vunpack.c.l.b16 %v300
        %v381 = vunpack.c.l.b16 %v301
        %v382 = vunpack.c.l.b16 %v302
        %v383 = vunpack.c.l.b16 %v303
        %v384 = vunpack.c.l.b16 %v304
        %v385 = vunpack.c.l.b16 %v305
        %v386 = vpack.c.b16 %v371, %v370
        %v387 = vpack.c.b16 %v373, %v372
        %v388 = vpack.c.b16 %v375, %v374
        %v389 = vpack.c.b16 %v377, %v376
        %v390 = vpack.c.b16 %v379, %v378
        %v391 = vpack.c.b16 %v381, %v380
        %v392 = vpack.c.b16 %v383, %v382
        %v393 = vpack.c.b16 %v385, %v384
        %402 = vmatprep.subr.bf16.mxu0 0
        %403 = vmatpush1.bf16.msra.mxu0 %v386
        %404 = vmatprep.subr.bf16.mxu0 0
        %405 = vmatpush1.bf16.msra.mxu0 %v387
        %406 = vmatprep.subr.bf16.mxu0 0
        %407 = vmatpush1.bf16.msra.mxu0 %v388
        %408 = vmatprep.subr.bf16.mxu0 0
        %409 = vmatpush1.bf16.msra.mxu0 %v389
        %410 = vmatprep.subr.bf16.mxu0 0
        %411 = vmatpush1.bf16.msra.mxu0 %v390
        %412 = vmatprep.subr.bf16.mxu0 0
        %413 = vmatpush1.bf16.msra.mxu0 %v391
        %414 = vmatprep.subr.bf16.mxu0 0
        %415 = vmatpush1.bf16.msra.mxu0 %v392
        %416 = vmatprep.subr.bf16.mxu0 0
        %417 = vmatpush1.bf16.msra.mxu0 %v393
        %418 = vmatprep.subr.bf16.mxu0 0
        %419 = vmatpush1.bf16.msra.mxu0 0
        %420 = vmatprep.subr.bf16.mxu0 0
        %421 = vmatpush1.bf16.msra.mxu0 0
        %422 = vmatprep.subr.bf16.mxu0 0
        %423 = vmatpush1.bf16.msra.mxu0 0
        %424 = vmatprep.subr.bf16.mxu0 0
        %425 = vmatpush1.bf16.msra.mxu0 0
        %426 = vmatprep.subr.bf16.mxu0 0
        %427 = vmatpush1.bf16.msra.mxu0 0
        %428 = vmatprep.subr.bf16.mxu0 0
        %429 = vmatpush1.bf16.msra.mxu0 0
        %430 = vmatprep.subr.bf16.mxu0 0
        %431 = vmatpush1.bf16.msra.mxu0 0
        %432 = vmatprep.subr.bf16.mxu0 0
        %433 = vmatpush1.bf16.msra.mxu0 0
        %434 = vmatprep.mubr.bf16.mxu0 0
        %435 = vmatmul.mubr.bf16.gmra.mrb[0].mxu0 %v338
        %v436 = vpop.f32.mrb[0].mxu0
        %v437 = vadd.f32 0.0, %v436
        %v438 = vpop.f32.mrb[0].mxu0
        %v439 = vpop.f32.mrb[0].mxu0
        %v440 = vadd.f32 0.0, %v439
        %v441 = vpop.f32.mrb[0].mxu0
        %442 = vmatprep.mubr.bf16.mxu0 0
        %443 = vmatmul.mubr.bf16.gmra.mrb[0].mxu0 %v339
        %v444 = vpop.f32.mrb[0].mxu0
        %v445 = vadd.f32 0.0, %v444
        %v446 = vpop.f32.mrb[0].mxu0
        %v447 = vpop.f32.mrb[0].mxu0
        %v448 = vadd.f32 0.0, %v447
        %v449 = vpop.f32.mrb[0].mxu0
        %450 = vmatprep.mubr.bf16.mxu0 0
        %451 = vmatmul.mubr.bf16.gmra.mrb[0].mxu0 %v340
        %v452 = vpop.f32.mrb[0].mxu0
        %v453 = vadd.f32 0.0, %v452
        %v454 = vpop.f32.mrb[0].mxu0
        %v455 = vpop.f32.mrb[0].mxu0
        %v456 = vadd.f32 0.0, %v455
        %v457 = vpop.f32.mrb[0].mxu0
        %458 = vmatprep.mubr.bf16.mxu0 0
        %459 = vmatmul.mubr.bf16.gmra.mrb[0].mxu0 %v341
        %v460 = vpop.f32.mrb[0].mxu0
        %v461 = vadd.f32 0.0, %v460
        %v462 = vpop.f32.mrb[0].mxu0
        %v463 = vpop.f32.mrb[0].mxu0
        %v464 = vadd.f32 0.0, %v463
        %v465 = vpop.f32.mrb[0].mxu0
        %466 = vmatprep.mubr.bf16.mxu0 0
        %467 = vmatmul.mubr.bf16.gmra.mrb[0].mxu0 %v342
        %v468 = vpop.f32.mrb[0].mxu0
        %v469 = vadd.f32 0.0, %v468
        %v470 = vpop.f32.mrb[0].mxu0
        %v471 = vpop.f32.mrb[0].mxu0
        %v472 = vadd.f32 0.0, %v471
        %v473 = vpop.f32.mrb[0].mxu0
        %474 = vmatprep.mubr.bf16.mxu0 0
        %475 = vmatmul.mubr.bf16.gmra.mrb[0].mxu0 %v343
        %v476 = vpop.f32.mrb[0].mxu0
        %v477 = vadd.f32 0.0, %v476
        %v478 = vpop.f32.mrb[0].mxu0
        %v479 = vpop.f32.mrb[0].mxu0
        %v480 = vadd.f32 0.0, %v479
        %v481 = vpop.f32.mrb[0].mxu0
        %482 = vmatprep.mubr.bf16.mxu0 0
        %483 = vmatmul.mubr.bf16.gmra.mrb[0].mxu0 %v344
        %v484 = vpop.f32.mrb[0].mxu0
        %v485 = vadd.f32 0.0, %v484
        %v486 = vpop.f32.mrb[0].mxu0
        %v487 = vpop.f32.mrb[0].mxu0
        %v488 = vadd.f32 0.0, %v487
        %v489 = vpop.f32.mrb[0].mxu0
        %490 = vmatprep.mubr.bf16.mxu0 0
        %491 = vmatmul.mubr.bf16.gmra.mrb[0].mxu0 %v345
        %v492 = vpop.f32.mrb[0].mxu0
        %v493 = vadd.f32 0.0, %v492
        %v494 = vpop.f32.mrb[0].mxu0
        %v495 = vpop.f32.mrb[0].mxu0
        %v496 = vadd.f32 0.0, %v495
        %v497 = vpop.f32.mrb[0].mxu0
        %498 = vdwg.mxu0
        %v499 = vtanh.pop %v437
        %v500 = vtanh.pop %v440
        %v501 = vtanh.pop %v445
        %v502 = vtanh.pop %v448
        %v503 = vtanh.pop %v453
        %v504 = vtanh.pop %v456
        %v505 = vtanh.pop %v461
        %v506 = vtanh.pop %v464
        %v507 = vtanh.pop %v469
        %v508 = vtanh.pop %v472
        %v509 = vtanh.pop %v477
        %v510 = vtanh.pop %v480
        %v511 = vtanh.pop %v485
        %v512 = vtanh.pop %v488
        %v513 = vtanh.pop %v493
        %v514 = vtanh.pop %v496
        %v515 = vld [vmem:[%s2] sm:$0x1]
        %v517 = vlaneseq
        %v518 = vshrl.u32 %v517, 7
        %v519 = vsub.s32 0, %v518
        %v520 = vrot.slane %v515, %v519
        %v522 = vmul.f32 %v499, %v520
        %v523 = vmul.f32 %v500, %v520
        %v524 = vmul.f32 %v501, %v520
        %v525 = vmul.f32 %v502, %v520
        %v526 = vmul.f32 %v503, %v520
        %v527 = vmul.f32 %v504, %v520
        %v528 = vmul.f32 %v505, %v520
        %v529 = vmul.f32 %v506, %v520
        %v530 = vmul.f32 %v507, %v520
        %v531 = vmul.f32 %v508, %v520
        %v532 = vmul.f32 %v509, %v520
        %v533 = vmul.f32 %v510, %v520
        %v534 = vmul.f32 %v511, %v520
        %v535 = vmul.f32 %v512, %v520
        %v536 = vmul.f32 %v513, %v520
        %v537 = vmul.f32 %v514, %v520
        %538 = vadd.xlane.f32.xlu0 %v522
        %v539 = vpop.xlane.xlu0 %538
        %540 = vadd.xlane.f32.xlu0 %v523
        %v541 = vpop.xlane.xlu0 %540
        %542 = vadd.xlane.f32.xlu0 %v524
        %v543 = vpop.xlane.xlu0 %542
        %544 = vadd.xlane.f32.xlu0 %v525
        %v545 = vpop.xlane.xlu0 %544
        %546 = vadd.xlane.f32.xlu0 %v526
        %v547 = vpop.xlane.xlu0 %546
        %548 = vadd.xlane.f32.xlu0 %v527
        %v549 = vpop.xlane.xlu0 %548
        %550 = vadd.xlane.f32.xlu0 %v528
        %v551 = vpop.xlane.xlu0 %550
        %552 = vadd.xlane.f32.xlu0 %v529
        %v553 = vpop.xlane.xlu0 %552
        %554 = vadd.xlane.f32.xlu0 %v530
        %v555 = vpop.xlane.xlu0 %554
        %556 = vadd.xlane.f32.xlu0 %v531
        %v557 = vpop.xlane.xlu0 %556
        %558 = vadd.xlane.f32.xlu0 %v532
        %v559 = vpop.xlane.xlu0 %558
        %560 = vadd.xlane.f32.xlu0 %v533
        %v561 = vpop.xlane.xlu0 %560
        %562 = vadd.xlane.f32.xlu0 %v534
        %v563 = vpop.xlane.xlu0 %562
        %564 = vadd.xlane.f32.xlu0 %v535
        %v565 = vpop.xlane.xlu0 %564
        %566 = vadd.xlane.f32.xlu0 %v536
        %v567 = vpop.xlane.xlu0 %566
        %568 = vadd.xlane.f32.xlu0 %v537
        %v569 = vpop.xlane.xlu0 %568
        %v586 = vlaneseq
        %v587 = vand.u32 %v586, 127
        %v588 = vlaneseq
        %v589 = vshrl.u32 %v588, 7
        %v590 = vsub.s32 %v587, %v589
        %v591 = vrot.slane %v539, %v590
        %v592 = vadd.s32 %v587, 4294967288
        %v593 = vlaneseq
        %v594 = vshrl.u32 %v593, 7
        %v595 = vsub.s32 %v592, %v594
        %v596 = vrot.slane %v541, %v595
        %vm597 = vcmask 130112
        %v598 = vsel %vm597, %v596, %v591
        %v599 = vlaneseq
        %v600 = vshrl.u32 %v599, 7
        %v601 = vsub.s32 %v587, %v600
        %v602 = vrot.slane %v543, %v601
        %v603 = vlaneseq
        %v604 = vshrl.u32 %v603, 7
        %v605 = vsub.s32 %v592, %v604
        %v606 = vrot.slane %v545, %v605
        %v607 = vsel %vm597, %v606, %v602
        %v608 = vlaneseq
        %v609 = vshrl.u32 %v608, 7
        %v610 = vsub.s32 %v587, %v609
        %v611 = vrot.slane %v547, %v610
        %v612 = vlaneseq
        %v613 = vshrl.u32 %v612, 7
        %v614 = vsub.s32 %v592, %v613
        %v615 = vrot.slane %v549, %v614
        %v616 = vsel %vm597, %v615, %v611
        %v617 = vlaneseq
        %v618 = vshrl.u32 %v617, 7
        %v619 = vsub.s32 %v587, %v618
        %v620 = vrot.slane %v551, %v619
        %v621 = vlaneseq
        %v622 = vshrl.u32 %v621, 7
        %v623 = vsub.s32 %v592, %v622
        %v624 = vrot.slane %v553, %v623
        %v625 = vsel %vm597, %v624, %v620
        %v626 = vlaneseq
        %v627 = vshrl.u32 %v626, 7
        %v628 = vsub.s32 %v587, %v627
        %v629 = vrot.slane %v555, %v628
        %v630 = vlaneseq
        %v631 = vshrl.u32 %v630, 7
        %v632 = vsub.s32 %v592, %v631
        %v633 = vrot.slane %v557, %v632
        %v634 = vsel %vm597, %v633, %v629
        %v635 = vlaneseq
        %v636 = vshrl.u32 %v635, 7
        %v637 = vsub.s32 %v587, %v636
        %v638 = vrot.slane %v559, %v637
        %v639 = vlaneseq
        %v640 = vshrl.u32 %v639, 7
        %v641 = vsub.s32 %v592, %v640
        %v642 = vrot.slane %v561, %v641
        %v643 = vsel %vm597, %v642, %v638
        %v644 = vlaneseq
        %v645 = vshrl.u32 %v644, 7
        %v646 = vsub.s32 %v587, %v645
        %v647 = vrot.slane %v563, %v646
        %v648 = vlaneseq
        %v649 = vshrl.u32 %v648, 7
        %v650 = vsub.s32 %v592, %v649
        %v651 = vrot.slane %v565, %v650
        %v652 = vsel %vm597, %v651, %v647
        %v653 = vlaneseq
        %v654 = vshrl.u32 %v653, 7
        %v655 = vsub.s32 %v587, %v654
        %v656 = vrot.slane %v567, %v655
        %v657 = vlaneseq
        %v658 = vshrl.u32 %v657, 7
        %v659 = vsub.s32 %v592, %v658
        %v660 = vrot.slane %v569, %v659
        %v661 = vsel %vm597, %v660, %v656
        %vm662 = vcmask 1041409
        %v663 = vsel %vm662, %v607, %v598
        %vm664 = vcmask 1042434
        %v665 = vsel %vm664, %v616, %v663
        %vm666 = vcmask 1043459
        %v667 = vsel %vm666, %v625, %v665
        %vm668 = vcmask 1044484
        %v669 = vsel %vm668, %v634, %v667
        %vm670 = vcmask 1045509
        %v671 = vsel %vm670, %v643, %v669
        %vm672 = vcmask 1046534
        %v673 = vsel %vm672, %v652, %v671
        %vm674 = vcmask 1047559
        %v675 = vsel %vm674, %v661, %v673
        %vm677 = vcmask 130048
        %v678 = vsel %vm677, %v675, -inf
        %679 = vmax.xlane.f32.xlu0 %v678
        %v680 = vpop.xlane.xlu0 %679
        %v682 = vlaneseq
        %v683 = vshrl.u32 %v682, 7
        %v684 = vsub.s32 0, %v683
        %v685 = vrot.slane %v680, %v684
        %v686 = vlaneseq
        %v687 = vshrl.u32 %v686, 7
        %v688 = vsub.s32 1, %v687
        %v689 = vrot.slane %v680, %v688
        %v690 = vlaneseq
        %v691 = vshrl.u32 %v690, 7
        %v692 = vsub.s32 2, %v691
        %v693 = vrot.slane %v680, %v692
        %v694 = vlaneseq
        %v695 = vshrl.u32 %v694, 7
        %v696 = vsub.s32 3, %v695
        %v697 = vrot.slane %v680, %v696
        %v698 = vlaneseq
        %v699 = vshrl.u32 %v698, 7
        %v700 = vsub.s32 4, %v699
        %v701 = vrot.slane %v680, %v700
        %v702 = vlaneseq
        %v703 = vshrl.u32 %v702, 7
        %v704 = vsub.s32 5, %v703
        %v705 = vrot.slane %v680, %v704
        %v706 = vlaneseq
        %v707 = vshrl.u32 %v706, 7
        %v708 = vsub.s32 6, %v707
        %v709 = vrot.slane %v680, %v708
        %v710 = vlaneseq
        %v711 = vshrl.u32 %v710, 7
        %v712 = vsub.s32 7, %v711
        %v713 = vrot.slane %v680, %v712
        %v722 = vsub.f32 %v539, %v685
        %v723 = vsub.f32 %v541, %v685
        %v724 = vsub.f32 %v543, %v689
        %v725 = vsub.f32 %v545, %v689
        %v726 = vsub.f32 %v547, %v693
        %v727 = vsub.f32 %v549, %v693
        %v728 = vsub.f32 %v551, %v697
        %v729 = vsub.f32 %v553, %v697
        %v730 = vsub.f32 %v555, %v701
        %v731 = vsub.f32 %v557, %v701
        %v732 = vsub.f32 %v559, %v705
        %v733 = vsub.f32 %v561, %v705
        %v734 = vsub.f32 %v563, %v709
        %v735 = vsub.f32 %v565, %v709
        %v736 = vsub.f32 %v567, %v713
        %v737 = vsub.f32 %v569, %v713
        %v738 = vmul.f32 %v722, 1.442695
        %v739 = vpow.pop %v738
        %v740 = vmul.f32 %v723, 1.442695
        %v741 = vpow.pop %v740
        %v742 = vmul.f32 %v724, 1.442695
        %v743 = vpow.pop %v742
        %v744 = vmul.f32 %v725, 1.442695
        %v745 = vpow.pop %v744
        %v746 = vmul.f32 %v726, 1.442695
        %v747 = vpow.pop %v746
        %v748 = vmul.f32 %v727, 1.442695
        %v749 = vpow.pop %v748
        %v750 = vmul.f32 %v728, 1.442695
        %v751 = vpow.pop %v750
        %v752 = vmul.f32 %v729, 1.442695
        %v753 = vpow.pop %v752
        %v754 = vmul.f32 %v730, 1.442695
        %v755 = vpow.pop %v754
        %v756 = vmul.f32 %v731, 1.442695
        %v757 = vpow.pop %v756
        %v758 = vmul.f32 %v732, 1.442695
        %v759 = vpow.pop %v758
        %v760 = vmul.f32 %v733, 1.442695
        %v761 = vpow.pop %v760
        %v762 = vmul.f32 %v734, 1.442695
        %v763 = vpow.pop %v762
        %v764 = vmul.f32 %v735, 1.442695
        %v765 = vpow.pop %v764
        %v766 = vmul.f32 %v736, 1.442695
        %v767 = vpow.pop %v766
        %v768 = vmul.f32 %v737, 1.442695
        %v769 = vpow.pop %v768
        %786 = vset.pattern.permute.xlu0 0
        %787 = vperm.xlu0 %786, %v739
        %v788 = vpop.permute.xlu0 %787
        %789 = vset.pattern.permute.xlu0 0
        %790 = vperm.xlu0 %789, %v741
        %v791 = vpop.permute.xlu0 %790
        %792 = vset.pattern.permute.xlu0 0
        %793 = vperm.xlu0 %792, %v743
        %v794 = vpop.permute.xlu0 %793
        %795 = vset.pattern.permute.xlu0 0
        %796 = vperm.xlu0 %795, %v745
        %v797 = vpop.permute.xlu0 %796
        %798 = vset.pattern.permute.xlu0 0
        %799 = vperm.xlu0 %798, %v747
        %v800 = vpop.permute.xlu0 %799
        %801 = vset.pattern.permute.xlu0 0
        %802 = vperm.xlu0 %801, %v749
        %v803 = vpop.permute.xlu0 %802
        %804 = vset.pattern.permute.xlu0 0
        %805 = vperm.xlu0 %804, %v751
        %v806 = vpop.permute.xlu0 %805
        %807 = vset.pattern.permute.xlu0 0
        %808 = vperm.xlu0 %807, %v753
        %v809 = vpop.permute.xlu0 %808
        %810 = vset.pattern.permute.xlu0 0
        %811 = vperm.xlu0 %810, %v755
        %v812 = vpop.permute.xlu0 %811
        %813 = vset.pattern.permute.xlu0 0
        %814 = vperm.xlu0 %813, %v757
        %v815 = vpop.permute.xlu0 %814
        %816 = vset.pattern.permute.xlu0 0
        %817 = vperm.xlu0 %816, %v759
        %v818 = vpop.permute.xlu0 %817
        %819 = vset.pattern.permute.xlu0 0
        %820 = vperm.xlu0 %819, %v761
        %v821 = vpop.permute.xlu0 %820
        %822 = vset.pattern.permute.xlu0 0
        %823 = vperm.xlu0 %822, %v763
        %v824 = vpop.permute.xlu0 %823
        %825 = vset.pattern.permute.xlu0 0
        %826 = vperm.xlu0 %825, %v765
        %v827 = vpop.permute.xlu0 %826
        %828 = vset.pattern.permute.xlu0 0
        %829 = vperm.xlu0 %828, %v767
        %v830 = vpop.permute.xlu0 %829
        %831 = vset.pattern.permute.xlu0 0
        %832 = vperm.xlu0 %831, %v769
        %v833 = vpop.permute.xlu0 %832
        %v834 = vlaneseq
        %v835 = vshrl.u32 %v834, 7
        %v836 = vsub.s32 %v587, %v835
        %v837 = vrot.slane %v788, %v836
        %v838 = vlaneseq
        %v839 = vshrl.u32 %v838, 7
        %v840 = vsub.s32 %v592, %v839
        %v841 = vrot.slane %v791, %v840
        %v842 = vsel %vm597, %v841, %v837
        %v843 = vlaneseq
        %v844 = vshrl.u32 %v843, 7
        %v845 = vsub.s32 %v587, %v844
        %v846 = vrot.slane %v794, %v845
        %v847 = vlaneseq
        %v848 = vshrl.u32 %v847, 7
        %v849 = vsub.s32 %v592, %v848
        %v850 = vrot.slane %v797, %v849
        %v851 = vsel %vm597, %v850, %v846
        %v852 = vlaneseq
        %v853 = vshrl.u32 %v852, 7
        %v854 = vsub.s32 %v587, %v853
        %v855 = vrot.slane %v800, %v854
        %v856 = vlaneseq
        %v857 = vshrl.u32 %v856, 7
        %v858 = vsub.s32 %v592, %v857
        %v859 = vrot.slane %v803, %v858
        %v860 = vsel %vm597, %v859, %v855
        %v861 = vlaneseq
        %v862 = vshrl.u32 %v861, 7
        %v863 = vsub.s32 %v587, %v862
        %v864 = vrot.slane %v806, %v863
        %v865 = vlaneseq
        %v866 = vshrl.u32 %v865, 7
        %v867 = vsub.s32 %v592, %v866
        %v868 = vrot.slane %v809, %v867
        %v869 = vsel %vm597, %v868, %v864
        %v870 = vlaneseq
        %v871 = vshrl.u32 %v870, 7
        %v872 = vsub.s32 %v587, %v871
        %v873 = vrot.slane %v812, %v872
        %v874 = vlaneseq
        %v875 = vshrl.u32 %v874, 7
        %v876 = vsub.s32 %v592, %v875
        %v877 = vrot.slane %v815, %v876
        %v878 = vsel %vm597, %v877, %v873
        %v879 = vlaneseq
        %v880 = vshrl.u32 %v879, 7
        %v881 = vsub.s32 %v587, %v880
        %v882 = vrot.slane %v818, %v881
        %v883 = vlaneseq
        %v884 = vshrl.u32 %v883, 7
        %v885 = vsub.s32 %v592, %v884
        %v886 = vrot.slane %v821, %v885
        %v887 = vsel %vm597, %v886, %v882
        %v888 = vlaneseq
        %v889 = vshrl.u32 %v888, 7
        %v890 = vsub.s32 %v587, %v889
        %v891 = vrot.slane %v824, %v890
        %v892 = vlaneseq
        %v893 = vshrl.u32 %v892, 7
        %v894 = vsub.s32 %v592, %v893
        %v895 = vrot.slane %v827, %v894
        %v896 = vsel %vm597, %v895, %v891
        %v897 = vlaneseq
        %v898 = vshrl.u32 %v897, 7
        %v899 = vsub.s32 %v587, %v898
        %v900 = vrot.slane %v830, %v899
        %v901 = vlaneseq
        %v902 = vshrl.u32 %v901, 7
        %v903 = vsub.s32 %v592, %v902
        %v904 = vrot.slane %v833, %v903
        %v905 = vsel %vm597, %v904, %v900
        %v906 = vsel %vm662, %v851, %v842
        %v907 = vsel %vm664, %v860, %v906
        %v908 = vsel %vm666, %v869, %v907
        %v909 = vsel %vm668, %v878, %v908
        %v910 = vsel %vm670, %v887, %v909
        %v911 = vsel %vm672, %v896, %v910
        %v912 = vsel %vm674, %v905, %v911
        %v914 = vsel %vm677, %v912, 0.0
        %915 = vadd.xlane.f32.xlu0 %v914
        %v916 = vpop.xlane.xlu0 %915
        %v917 = vrcp.pop %v916
        %v919 = vlaneseq
        %v920 = vshrl.u32 %v919, 7
        %v921 = vsub.s32 0, %v920
        %v922 = vrot.slane %v917, %v921
        %v923 = vlaneseq
        %v924 = vshrl.u32 %v923, 7
        %v925 = vsub.s32 1, %v924
        %v926 = vrot.slane %v917, %v925
        %v927 = vlaneseq
        %v928 = vshrl.u32 %v927, 7
        %v929 = vsub.s32 2, %v928
        %v930 = vrot.slane %v917, %v929
        %v931 = vlaneseq
        %v932 = vshrl.u32 %v931, 7
        %v933 = vsub.s32 3, %v932
        %v934 = vrot.slane %v917, %v933
        %v935 = vlaneseq
        %v936 = vshrl.u32 %v935, 7
        %v937 = vsub.s32 4, %v936
        %v938 = vrot.slane %v917, %v937
        %v939 = vlaneseq
        %v940 = vshrl.u32 %v939, 7
        %v941 = vsub.s32 5, %v940
        %v942 = vrot.slane %v917, %v941
        %v943 = vlaneseq
        %v944 = vshrl.u32 %v943, 7
        %v945 = vsub.s32 6, %v944
        %v946 = vrot.slane %v917, %v945
        %v947 = vlaneseq
        %v948 = vshrl.u32 %v947, 7
        %v949 = vsub.s32 7, %v948
        %v950 = vrot.slane %v917, %v949
        %v959 = vmul.f32 %v739, %v922
        %v960 = vmul.f32 %v741, %v922
        %v961 = vmul.f32 %v743, %v926
        %v962 = vmul.f32 %v745, %v926
        %v963 = vmul.f32 %v747, %v930
        %v964 = vmul.f32 %v749, %v930
        %v965 = vmul.f32 %v751, %v934
        %v966 = vmul.f32 %v753, %v934
        %v967 = vmul.f32 %v755, %v938
        %v968 = vmul.f32 %v757, %v938
        %v969 = vmul.f32 %v759, %v942
        %v970 = vmul.f32 %v761, %v942
        %v971 = vmul.f32 %v763, %v946
        %v972 = vmul.f32 %v765, %v946
        %v973 = vmul.f32 %v767, %v950
        %v974 = vmul.f32 %v769, %v950
        %976 = vset.pattern.permute.xlu0 0
        %977 = vperm.xlu0 %976, %v959
        %v978 = vpop.permute.xlu0 %977
        %981 = vset.pattern.permute.xlu0 0
        %982 = vperm.xlu0 %981, %v960
        %v983 = vpop.permute.xlu0 %982
        %986 = vset.pattern.permute.xlu0 0
        %987 = vperm.xlu0 %986, %v961
        %v988 = vpop.permute.xlu0 %987
        %991 = vset.pattern.permute.xlu0 0
        %992 = vperm.xlu0 %991, %v962
        %v993 = vpop.permute.xlu0 %992
        %996 = vset.pattern.permute.xlu0 0
        %997 = vperm.xlu0 %996, %v963
        %v998 = vpop.permute.xlu0 %997
        %1001 = vset.pattern.permute.xlu0 0
        %1002 = vperm.xlu0 %1001, %v964
        %v1003 = vpop.permute.xlu0 %1002
        %1006 = vset.pattern.permute.xlu0 0
        %1007 = vperm.xlu0 %1006, %v965
        %v1008 = vpop.permute.xlu0 %1007
        %1011 = vset.pattern.permute.xlu0 0
        %1012 = vperm.xlu0 %1011, %v966
        %v1013 = vpop.permute.xlu0 %1012
        %1016 = vset.pattern.permute.xlu0 0
        %1017 = vperm.xlu0 %1016, %v967
        %v1018 = vpop.permute.xlu0 %1017
        %1021 = vset.pattern.permute.xlu0 0
        %1022 = vperm.xlu0 %1021, %v968
        %v1023 = vpop.permute.xlu0 %1022
        %1026 = vset.pattern.permute.xlu0 0
        %1027 = vperm.xlu0 %1026, %v969
        %v1028 = vpop.permute.xlu0 %1027
        %1031 = vset.pattern.permute.xlu0 0
        %1032 = vperm.xlu0 %1031, %v970
        %v1033 = vpop.permute.xlu0 %1032
        %1036 = vset.pattern.permute.xlu0 0
        %1037 = vperm.xlu0 %1036, %v971
        %v1038 = vpop.permute.xlu0 %1037
        %1041 = vset.pattern.permute.xlu0 0
        %1042 = vperm.xlu0 %1041, %v972
        %v1043 = vpop.permute.xlu0 %1042
        %1046 = vset.pattern.permute.xlu0 0
        %1047 = vperm.xlu0 %1046, %v973
        %v1048 = vpop.permute.xlu0 %1047
        %1051 = vset.pattern.permute.xlu0 0
        %1052 = vperm.xlu0 %1051, %v974
        %v1053 = vpop.permute.xlu0 %1052
        %v1055 = vmul.f32 %v499, %v978
        %v1056 = vmul.f32 %v500, %v983
        %v1057 = vmul.f32 %v501, %v988
        %v1058 = vmul.f32 %v502, %v993
        %v1059 = vmul.f32 %v503, %v998
        %v1060 = vmul.f32 %v504, %v1003
        %v1061 = vmul.f32 %v505, %v1008
        %v1062 = vmul.f32 %v506, %v1013
        %v1063 = vmul.f32 %v507, %v1018
        %v1064 = vmul.f32 %v508, %v1023
        %v1065 = vmul.f32 %v509, %v1028
        %v1066 = vmul.f32 %v510, %v1033
        %v1067 = vmul.f32 %v511, %v1038
        %v1068 = vmul.f32 %v512, %v1043
        %v1069 = vmul.f32 %v513, %v1048
        %v1070 = vmul.f32 %v514, %v1053
        %v1071 = vadd.f32 %v1055, %v1056
        %v1072 = vrot.slane %v1071, 4
        %v1073 = vadd.f32 %v1071, %v1072
        %v1074 = vrot.slane %v1073, 2
        %v1075 = vadd.f32 %v1073, %v1074
        %v1076 = vrot.slane %v1075, 1
        %v1077 = vadd.f32 %v1075, %v1076
        %v1078 = vadd.f32 %v1057, %v1058
        %v1079 = vrot.slane %v1078, 4
        %v1080 = vadd.f32 %v1078, %v1079
        %v1081 = vrot.slane %v1080, 2
        %v1082 = vadd.f32 %v1080, %v1081
        %v1083 = vrot.slane %v1082, 1
        %v1084 = vadd.f32 %v1082, %v1083
        %v1085 = vadd.f32 %v1059, %v1060
        %v1086 = vrot.slane %v1085, 4
        %v1087 = vadd.f32 %v1085, %v1086
        %v1088 = vrot.slane %v1087, 2
        %v1089 = vadd.f32 %v1087, %v1088
        %v1090 = vrot.slane %v1089, 1
        %v1091 = vadd.f32 %v1089, %v1090
        %v1092 = vadd.f32 %v1061, %v1062
        %v1093 = vrot.slane %v1092, 4
        %v1094 = vadd.f32 %v1092, %v1093
        %v1095 = vrot.slane %v1094, 2
        %v1096 = vadd.f32 %v1094, %v1095
        %v1097 = vrot.slane %v1096, 1
        %v1098 = vadd.f32 %v1096, %v1097
        %v1099 = vadd.f32 %v1063, %v1064
        %v1100 = vrot.slane %v1099, 4
        %v1101 = vadd.f32 %v1099, %v1100
        %v1102 = vrot.slane %v1101, 2
        %v1103 = vadd.f32 %v1101, %v1102
        %v1104 = vrot.slane %v1103, 1
        %v1105 = vadd.f32 %v1103, %v1104
        %v1106 = vadd.f32 %v1065, %v1066
        %v1107 = vrot.slane %v1106, 4
        %v1108 = vadd.f32 %v1106, %v1107
        %v1109 = vrot.slane %v1108, 2
        %v1110 = vadd.f32 %v1108, %v1109
        %v1111 = vrot.slane %v1110, 1
        %v1112 = vadd.f32 %v1110, %v1111
        %v1113 = vadd.f32 %v1067, %v1068
        %v1114 = vrot.slane %v1113, 4
        %v1115 = vadd.f32 %v1113, %v1114
        %v1116 = vrot.slane %v1115, 2
        %v1117 = vadd.f32 %v1115, %v1116
        %v1118 = vrot.slane %v1117, 1
        %v1119 = vadd.f32 %v1117, %v1118
        %v1120 = vadd.f32 %v1069, %v1070
        %v1121 = vrot.slane %v1120, 4
        %v1122 = vadd.f32 %v1120, %v1121
        %v1123 = vrot.slane %v1122, 2
        %v1124 = vadd.f32 %v1122, %v1123
        %v1125 = vrot.slane %v1124, 1
        %v1126 = vadd.f32 %v1124, %v1125
        %v1127 = vpack.c.bf16 %v1077, %v1077
        %v1128 = vpack.c.bf16 %v1084, %v1084
        %v1129 = vpack.c.bf16 %v1091, %v1091
        %v1130 = vpack.c.bf16 %v1098, %v1098
        %v1131 = vpack.c.bf16 %v1105, %v1105
        %v1132 = vpack.c.bf16 %v1112, %v1112
        %v1133 = vpack.c.bf16 %v1119, %v1119
        %v1134 = vpack.c.bf16 %v1126, %v1126
        %v1135 = vld [vmem:[#allocation7] sm:$0xf]
        %v1136 = vld [vmem:[#allocation7 + $0x4] sm:$0xf]
        %v1137 = vld [vmem:[#allocation7 + $0x8] sm:$0xf]
        %v1138 = vld [vmem:[#allocation7 + $0xc] sm:$0xf]
        %v1139 = vld [vmem:[#allocation7 + $0x10] sm:$0xf]
        %v1140 = vld [vmem:[#allocation7 + $0x14] sm:$0xf]
        %v1141 = vld [vmem:[#allocation7 + $0x18] sm:$0xf]
        %v1142 = vld [vmem:[#allocation7 + $0x1c] sm:$0xf]
        %v1143 = vld [vmem:[#allocation7 + $0x20] sm:$0xf]
        %v1144 = vld [vmem:[#allocation7 + $0x24] sm:$0xf]
        %v1145 = vld [vmem:[#allocation7 + $0x28] sm:$0xf]
        %v1146 = vld [vmem:[#allocation7 + $0x2c] sm:$0xf]
        %v1147 = vld [vmem:[#allocation7 + $0x30] sm:$0xf]
        %v1148 = vld [vmem:[#allocation7 + $0x34] sm:$0xf]
        %v1149 = vld [vmem:[#allocation7 + $0x38] sm:$0xf]
        %v1150 = vld [vmem:[#allocation7 + $0x3c] sm:$0xf]
        %v1151 = vld [vmem:[%s4] sm:$0x1]
        %v1153 = vlaneseq
        %v1154 = vshrl.u32 %v1153, 7
        %v1155 = vsub.s32 0, %v1154
        %v1156 = vrot.slane %v1151, %v1155
        %v1166 = vunpack.c.l.b16 %v1127
        %v1167 = vunpack.c.l.b16 %v1128
        %v1168 = vunpack.c.l.b16 %v1129
        %v1169 = vunpack.c.l.b16 %v1130
        %v1170 = vunpack.c.l.b16 %v1131
        %v1171 = vunpack.c.l.b16 %v1132
        %v1172 = vunpack.c.l.b16 %v1133
        %v1173 = vunpack.c.l.b16 %v1134
        %v1174 = vsel %vm662, %v1167, %v1166
        %v1175 = vsel %vm664, %v1168, %v1174
        %v1176 = vsel %vm666, %v1169, %v1175
        %v1177 = vsel %vm668, %v1170, %v1176
        %v1178 = vsel %vm670, %v1171, %v1177
        %v1179 = vsel %vm672, %v1172, %v1178
        %v1180 = vsel %vm674, %v1173, %v1179
        %v1181 = vpack.c.b16 %v1180, %v1180
        %v1199 = vunpack.c.l.b16 %v1135
        %v1200 = vunpack.c.l.b16 %v1136
        %v1201 = vunpack.c.l.b16 %v1137
        %v1202 = vunpack.c.l.b16 %v1138
        %v1203 = vunpack.c.l.b16 %v1139
        %v1204 = vunpack.c.l.b16 %v1140
        %v1205 = vunpack.c.l.b16 %v1141
        %v1206 = vunpack.c.l.b16 %v1142
        %v1207 = vunpack.c.l.b16 %v1143
        %v1208 = vunpack.c.l.b16 %v1144
        %v1209 = vunpack.c.l.b16 %v1145
        %v1210 = vunpack.c.l.b16 %v1146
        %v1211 = vunpack.c.l.b16 %v1147
        %v1212 = vunpack.c.l.b16 %v1148
        %v1213 = vunpack.c.l.b16 %v1149
        %v1214 = vunpack.c.l.b16 %v1150
        %v1215 = vpack.c.b16 %v1200, %v1199
        %v1216 = vpack.c.b16 %v1202, %v1201
        %v1217 = vpack.c.b16 %v1204, %v1203
        %v1218 = vpack.c.b16 %v1206, %v1205
        %v1219 = vpack.c.b16 %v1208, %v1207
        %v1220 = vpack.c.b16 %v1210, %v1209
        %v1221 = vpack.c.b16 %v1212, %v1211
        %v1222 = vpack.c.b16 %v1214, %v1213
        %1231 = vmatprep.subr.bf16.mxu0 0
        %1232 = vmatpush1.bf16.msra.mxu0 %v1215
        %1233 = vmatprep.subr.bf16.mxu0 0
        %1234 = vmatpush1.bf16.msra.mxu0 %v1216
        %1235 = vmatprep.subr.bf16.mxu0 0
        %1236 = vmatpush1.bf16.msra.mxu0 %v1217
        %1237 = vmatprep.subr.bf16.mxu0 0
        %1238 = vmatpush1.bf16.msra.mxu0 %v1218
        %1239 = vmatprep.subr.bf16.mxu0 0
        %1240 = vmatpush1.bf16.msra.mxu0 %v1219
        %1241 = vmatprep.subr.bf16.mxu0 0
        %1242 = vmatpush1.bf16.msra.mxu0 %v1220
        %1243 = vmatprep.subr.bf16.mxu0 0
        %1244 = vmatpush1.bf16.msra.mxu0 %v1221
        %1245 = vmatprep.subr.bf16.mxu0 0
        %1246 = vmatpush1.bf16.msra.mxu0 %v1222
        %1247 = vmatprep.subr.bf16.mxu0 0
        %1248 = vmatpush1.bf16.msra.mxu0 0
        %1249 = vmatprep.subr.bf16.mxu0 0
        %1250 = vmatpush1.bf16.msra.mxu0 0
        %1251 = vmatprep.subr.bf16.mxu0 0
        %1252 = vmatpush1.bf16.msra.mxu0 0
        %1253 = vmatprep.subr.bf16.mxu0 0
        %1254 = vmatpush1.bf16.msra.mxu0 0
        %1255 = vmatprep.subr.bf16.mxu0 0
        %1256 = vmatpush1.bf16.msra.mxu0 0
        %1257 = vmatprep.subr.bf16.mxu0 0
        %1258 = vmatpush1.bf16.msra.mxu0 0
        %1259 = vmatprep.subr.bf16.mxu0 0
        %1260 = vmatpush1.bf16.msra.mxu0 0
        %1261 = vmatprep.subr.bf16.mxu0 0
        %1262 = vmatpush1.bf16.msra.mxu0 0
        %1263 = vmatprep.mubr.bf16.mxu0 0
        %1264 = vmatmul.mubr.bf16.gmra.mrb[0].mxu0 %v1181
        %v1265 = vpop.f32.mrb[0].mxu0
        %v1266 = vadd.f32 %v1156, %v1265
        %v1267 = vpop.f32.mrb[0].mxu0
        %v1268 = vpop.f32.mrb[0].mxu0
        %v1269 = vpop.f32.mrb[0].mxu0
        %1270 = vdwg.mxu0
        %1271 = vst [vmem:[%s271] sm:$0xff] %v1266
        %s1272 = sand.u32 %s141, 1
        %s1273 = scalar_lea.sflag [#allocation4], %s1272
        %s1274 = sand.u32 %s141, 1
        %s1275 = smul.addr %s1274, 8
        %s1276 = scalar_lea.vmem [#allocation8], %s1275
        // Predicated region
        $region53: #{tpu_custom_call.1} parent=39 // pred_check
          %p1277 = pneg %p151
        $region54: #{tpu_custom_call.1} parent=39 // pred_check_branch
          %1279 = sbr.rel (%p1277) target = $region56
        $region55: #{tpu_custom_call.1} parent=39 // pred_region
          %s1281 = ssub.s32 128, 128
          %1282 = vsyncadd %s1273, %s1281
          %s1283 = smul.addr %s23, 128
          %s1284 = scalar_lea.hbm %s5, %s1283
          %s1286 = sshll.u32 %s1276, 4
          %s1287 = int_to_ptr.vmem [resolvable:$true] %s1286
          %1289 = dma.vmem_to_hbm [thread:$0]  %s1287, 128, %s1284, %s1273
        $region56: #{tpu_custom_call.1} parent=39 // pred_fallthru
          _
      $region40: #{tpu_custom_call.1} parent=5 // pred_fallthru
        _
      %p1290 = scmp.le.s32.totalorder 2, %s18
      // Predicated region
      $region57: #{tpu_custom_call.1} parent=5 // pred_check
        %p1291 = pneg %p1290
      $region58: #{tpu_custom_call.1} parent=5 // pred_check_branch
        %1293 = sbr.rel (%p1291) target = $region60
      $region59: #{tpu_custom_call.1} parent=5 // pred_region
        %s1294 = ssub.s32 %s18, 2
        // Predicated region
        $region61: #{tpu_custom_call.1} parent=59 // pred_check
          %p1295 = pneg %p157
        $region62: #{tpu_custom_call.1} parent=59 // pred_check_branch
          %1297 = sbr.rel (%p1295) target = $region64
        $region63: #{tpu_custom_call.1} parent=59 // pred_region
          %s1298 = sand.u32 %s142, 1
          %s1299 = scalar_lea.sflag [#allocation4], %s1298
          %s1300 = sand.u32 %s142, 1
          %s1301 = smul.addr %s1300, 8
          %s1302 = scalar_lea.vmem [#allocation8], %s1301
          %1303 = dma.done %s1299, 128
        $region64: #{tpu_custom_call.1} parent=59 // pred_fallthru
          _
      $region60: #{tpu_custom_call.1} parent=5 // pred_fallthru
        _
    $region6: #{tpu_custom_call.1} parent=1 // loop_footer
      %s22 = sadd.s32 1, %s18
    $region7: #{tpu_custom_call.1} parent=1 // loop_footer_branch
      %17 = sbr.rel target = $region3
    $region8: #{tpu_custom_call.1} parent=1 // loop_exit
      _
    %1304 = vsyncpa [#allocation3], 1
    %s1305 = scalar_lea.sflag [#allocation3], 1
    %1306 = vsyncpa %s1305, 1
    %1307 = vsyncpa [#allocation6], 1
    %1308 = vsyncpa [#allocation4], 1
    %s1309 = scalar_lea.sflag [#allocation4], 1
    %1310 = vsyncpa %s1309, 1

// kernel: tpu_custom_call.1
$region0: #{tpu_custom_call.1}
  #allocation0 [shape = 'u32[]', space=smem, size = 0x4, offset = 0x4, fixed_abs, tag = 'smem constant byte address 0x4 - core index']
  #allocation1 [shape = 'u32[144,128]{1,0:T(1,128)}', space=vmem, size = 0x12000, scoped, tag = 'internal scratch']
  %s0 = inlined_call_operand.hbm [shape: bf16[256,128], index: 0, kind: input, shape index: {}]
  %s1 = inlined_call_operand.hbm [shape: bf16[128,128], index: 1, kind: input, shape index: {}]
  %s2 = inlined_call_operand.vmem [shape: f32[1,128], index: 2, kind: input, shape index: {}]
  %s3 = inlined_call_operand.hbm [shape: bf16[128,128], index: 3, kind: input, shape index: {}]
  %s4 = inlined_call_operand.vmem [shape: f32[1,128], index: 4, kind: input, shape index: {}]
  %s5 = inlined_call_operand.hbm [shape: f32[16,128], index: 5, kind: output, shape index: {}]
  %s6 = sld [smem:[#allocation0]]
  $region65: #{tpu_custom_call.1} parent=0
    _
  %s8 = ssub.s32 1, %s6
  %s9 = scalar_select 0, %s8, %s6
  $region1: #{tpu_custom_call.1} parent=0
    #allocation2 [shape = 'u8[65536]{0}', space=vmem, size = 0x10000, scoped, tag = 'input window, operand 0']
    #allocation3 [shape = 's32[2]{0}', space=sflag, size = 0x8, scoped, tag = 'scoped memory for tpu_custom_call.1']
    #allocation4 [shape = 's32[2]{0}', space=sflag, size = 0x8, scoped, tag = 'scoped memory for tpu_custom_call.1']
    #allocation5 [shape = 'u8[32768]{0}', space=vmem, size = 0x8000, scoped, tag = 'input window, operand 1, single buffered']
    #allocation6 [shape = 's32[1]{0}', space=sflag, size = 0x4, scoped, tag = 'scoped memory for tpu_custom_call.1']
    #allocation7 [shape = 'u8[32768]{0}', space=vmem, size = 0x8000, scoped, tag = 'input window, operand 3, single buffered']
    #allocation8 [shape = 'u8[8192]{0}', space=vmem, size = 0x2000, scoped, tag = 'output window, operand 0']
    %10 = vsyncpa [#allocation3], 0
    %s11 = scalar_lea.sflag [#allocation3], 1
    %12 = vsyncpa %s11, 0
    %13 = vsyncpa [#allocation6], 0
    %14 = vsyncpa [#allocation4], 0
    %s15 = scalar_lea.sflag [#allocation4], 1
    %16 = vsyncpa %s15, 0
    loop: start=0, step=1, limit=4
    $region2: #{tpu_custom_call.1} parent=1 // loop_pre_header
      _
    $region3: #{tpu_custom_call.1} parent=1 // loop_header
      %s18 = sphi 0, %s22
      %p19 = scmp.ge.s32.totalorder %s18, 4
      %s28 = sphi 0, %s30
      %s31 = sphi 0, %s28
      %s32 = sphi 0, %s31
      %s48 = sphi 0, %s32
      %s52 = sphi 0, %s52
      %s54 = sphi 0, %s52
      %s55 = sphi 0, %s54
      %s69 = sphi 0, %s55
      %s73 = sphi 0, %s73
      %s75 = sphi 0, %s73
      %s76 = sphi 0, %s75
      %s90 = sphi 0, %s76
      %s94 = sphi 0, %s94
      %s96 = sphi 0, %s94
      %s97 = sphi 0, %s96
      %s111 = sphi 0, %s97
      %s115 = sphi 0, %s115
      %s117 = sphi 0, %s115
      %s118 = sphi 0, %s117
      %s132 = sphi 0, %s118
      %s138 = sphi 0, %s140
      %s141 = sphi 0, %s138
      %s142 = sphi 0, %s141
      %s158 = sphi 0, %s142
    $region4: #{tpu_custom_call.1} parent=1 // loop_header_branch
      %21 = sbr.rel (%p19) target = $region8
    $region5: #{tpu_custom_call.1} parent=1 // loop_body
      %s23 = ssub.s32 %s18, 1
      %s24 = ssub.s32 %s18, 2
      %s25 = sadd.s32 %s18, 1
      %s26 = ssub.s32 %s18, %s25
      %p27 = scmp.eq.s32.totalorder %s26, 0
      %s29 = sadd.s32 %s28, 1
      %s30 = scalar_select %p27, %s28, %s29
      %p33 = pneg %p27
      %p34 = scmp.eq.s32.totalorder %s18, 1
      %p35 = por %p33, %p34
      %p36 = scmp.ne.s32.totalorder %s28, %s31
      %p37 = scmp.eq.s32.totalorder %s18, 0
      %p38 = por %p36, %p37
      %p39 = scmp.ne.s32.totalorder %s28, %s31
      %p40 = scmp.eq.s32.totalorder %s23, 1
      %p41 = por %p39, %p40
      %p42 = scmp.ne.s32.totalorder %s31, %s32
      %p43 = scmp.eq.s32.totalorder %s23, 0
      %p44 = por %p42, %p43
      %p45 = scmp.ne.s32.totalorder %s31, %s32
      %p46 = scmp.eq.s32.totalorder %s24, 1
      %p47 = por %p45, %p46
      %p49 = scmp.ne.s32.totalorder %s32, %s48
      %p50 = scmp.eq.s32.totalorder %s24, 0
      %p51 = por %p49, %p50
      %s53 = sadd.s32 %s52, 1
      %p56 = scmp.eq.s32.totalorder %s18, 1
      %p57 = scmp.ne.s32.totalorder %s52, %s54
      %p58 = scmp.eq.s32.totalorder %s18, 0
      %p59 = por %p57, %p58
      %p60 = scmp.ne.s32.totalorder %s52, %s54
      %p61 = scmp.eq.s32.totalorder %s23, 1
      %p62 = por %p60, %p61
      %p63 = scmp.ne.s32.totalorder %s54, %s55
      %p64 = scmp.eq.s32.totalorder %s23, 0
      %p65 = por %p63, %p64
      %p66 = scmp.ne.s32.totalorder %s54, %s55
      %p67 = scmp.eq.s32.totalorder %s24, 1
      %p68 = por %p66, %p67
      %p70 = scmp.ne.s32.totalorder %s55, %s69
      %p71 = scmp.eq.s32.totalorder %s24, 0
      %p72 = por %p70, %p71
      %s74 = sadd.s32 %s73, 1
      %p77 = scmp.eq.s32.totalorder %s18, 1
      %p78 = scmp.ne.s32.totalorder %s73, %s75
      %p79 = scmp.eq.s32.totalorder %s18, 0
      %p80 = por %p78, %p79
      %p81 = scmp.ne.s32.totalorder %s73, %s75
      %p82 = scmp.eq.s32.totalorder %s23, 1
      %p83 = por %p81, %p82
      %p84 = scmp.ne.s32.totalorder %s75, %s76
      %p85 = scmp.eq.s32.totalorder %s23, 0
      %p86 = por %p84, %p85
      %p87 = scmp.ne.s32.totalorder %s75, %s76
      %p88 = scmp.eq.s32.totalorder %s24, 1
      %p89 = por %p87, %p88
      %p91 = scmp.ne.s32.totalorder %s76, %s90
      %p92 = scmp.eq.s32.totalorder %s24, 0
      %p93 = por %p91, %p92
      %s95 = sadd.s32 %s94, 1
      %p98 = scmp.eq.s32.totalorder %s18, 1
      %p99 = scmp.ne.s32.totalorder %s94, %s96
      %p100 = scmp.eq.s32.totalorder %s18, 0
      %p101 = por %p99, %p100
      %p102 = scmp.ne.s32.totalorder %s94, %s96
      %p103 = scmp.eq.s32.totalorder %s23, 1
      %p104 = por %p102, %p103
      %p105 = scmp.ne.s32.totalorder %s96, %s97
      %p106 = scmp.eq.s32.totalorder %s23, 0
      %p107 = por %p105, %p106
      %p108 = scmp.ne.s32.totalorder %s96, %s97
      %p109 = scmp.eq.s32.totalorder %s24, 1
      %p110 = por %p108, %p109
      %p112 = scmp.ne.s32.totalorder %s97, %s111
      %p113 = scmp.eq.s32.totalorder %s24, 0
      %p114 = por %p112, %p113
      %s116 = sadd.s32 %s115, 1
      %p119 = scmp.eq.s32.totalorder %s18, 1
      %p120 = scmp.ne.s32.totalorder %s115, %s117
      %p121 = scmp.eq.s32.totalorder %s18, 0
      %p122 = por %p120, %p121
      %p123 = scmp.ne.s32.totalorder %s115, %s117
      %p124 = scmp.eq.s32.totalorder %s23, 1
      %p125 = por %p123, %p124
      %p126 = scmp.ne.s32.totalorder %s117, %s118
      %p127 = scmp.eq.s32.totalorder %s23, 0
      %p128 = por %p126, %p127
      %p129 = scmp.ne.s32.totalorder %s117, %s118
      %p130 = scmp.eq.s32.totalorder %s24, 1
      %p131 = por %p129, %p130
      %p133 = scmp.ne.s32.totalorder %s118, %s132
      %p134 = scmp.eq.s32.totalorder %s24, 0
      %p135 = por %p133, %p134
      %s136 = ssub.s32 %s18, %s25
      %p137 = scmp.eq.s32.totalorder %s136, 0
      %s139 = sadd.s32 %s138, 1
      %s140 = scalar_select %p137, %s138, %s139
      %p143 = pneg %p137
      %p144 = scmp.eq.s32.totalorder %s18, 1
      %p145 = por %p143, %p144
      %p146 = scmp.ne.s32.totalorder %s138, %s141
      %p147 = scmp.eq.s32.totalorder %s18, 0
      %p148 = por %p146, %p147
      %p149 = scmp.ne.s32.totalorder %s138, %s141
      %p150 = scmp.eq.s32.totalorder %s23, 1
      %p151 = por %p149, %p150
      %p152 = scmp.ne.s32.totalorder %s141, %s142
      %p153 = scmp.eq.s32.totalorder %s23, 0
      %p154 = por %p152, %p153
      %p155 = scmp.ne.s32.totalorder %s141, %s142
      %p156 = scmp.eq.s32.totalorder %s24, 1
      %p157 = por %p155, %p156
      %p159 = scmp.ne.s32.totalorder %s142, %s158
      %p160 = scmp.eq.s32.totalorder %s24, 0
      %p161 = por %p159, %p160
      %p162 = scmp.le.s32.totalorder 1, %s18
      %p163 = scmp.lt.s32.totalorder %s18, 3
      %p164 = pnand %p162, %p163
      %p165 = pneg %p164
      // Predicated region
      $region9: #{tpu_custom_call.1} parent=5 // pred_check
        _
      $region10: #{tpu_custom_call.1} parent=5 // pred_check_branch
        %167 = sbr.rel (%p164) target = $region12
      $region11: #{tpu_custom_call.1} parent=5 // pred_region
        %s168 = ssub.s32 %s18, 1
        // Predicated region
        $region13: #{tpu_custom_call.1} parent=11 // pred_check
          %p169 = pneg %p65
        $region14: #{tpu_custom_call.1} parent=11 // pred_check_branch
          %171 = sbr.rel (%p169) target = $region16
        $region15: #{tpu_custom_call.1} parent=11 // pred_region
          %s173 = ssub.s32 1024, 1024
          %174 = vsyncadd [#allocation6], %s173
          %s175 = sshll.u32 [#allocation5], 4
          %s176 = int_to_ptr.vmem [resolvable:$true] %s175
          %181 = dma.hbm_to_vmem [thread:$0]  %s1, 1024, %s176, [#allocation6], 64, 64, 4
        $region16: #{tpu_custom_call.1} parent=11 // pred_fallthru
          _
        // Predicated region
        $region17: #{tpu_custom_call.1} parent=11 // pred_check
          %p182 = pneg %p86
        $region18: #{tpu_custom_call.1} parent=11 // pred_check_branch
          %184 = sbr.rel (%p182) target = $region20
        $region19: #{tpu_custom_call.1} parent=11 // pred_region
          _
        $region20: #{tpu_custom_call.1} parent=11 // pred_fallthru
          _
        // Predicated region
        $region21: #{tpu_custom_call.1} parent=11 // pred_check
          %p185 = pneg %p107
        $region22: #{tpu_custom_call.1} parent=11 // pred_check_branch
          %187 = sbr.rel (%p185) target = $region24
        $region23: #{tpu_custom_call.1} parent=11 // pred_region
          %s189 = ssub.s32 1024, 1024
          %190 = vsyncadd [#allocation6], %s189
          %s191 = sshll.u32 [#allocation7], 4
          %s192 = int_to_ptr.vmem [resolvable:$true] %s191
          %197 = dma.hbm_to_vmem [thread:$0]  %s3, 1024, %s192, [#allocation6], 64, 64, 4
        $region24: #{tpu_custom_call.1} parent=11 // pred_fallthru
          _
        // Predicated region
        $region25: #{tpu_custom_call.1} parent=11 // pred_check
          %p198 = pneg %p128
        $region26: #{tpu_custom_call.1} parent=11 // pred_check_branch
          %200 = sbr.rel (%p198) target = $region28
        $region27: #{tpu_custom_call.1} parent=11 // pred_region
          _
        $region28: #{tpu_custom_call.1} parent=11 // pred_fallthru
          _
      $region12: #{tpu_custom_call.1} parent=5 // pred_fallthru
        _
      %p201 = scmp.lt.s32.totalorder %s18, 2
      // Predicated region
      $region29: #{tpu_custom_call.1} parent=5 // pred_check
        %p202 = pneg %p201
      $region30: #{tpu_custom_call.1} parent=5 // pred_check_branch
        %204 = sbr.rel (%p202) target = $region32
      $region31: #{tpu_custom_call.1} parent=5 // pred_region
        // Predicated region
        $region33: #{tpu_custom_call.1} parent=31 // pred_check
          %p205 = pneg %p38
        $region34: #{tpu_custom_call.1} parent=31 // pred_check_branch
          %207 = sbr.rel (%p205) target = $region36
        $region35: #{tpu_custom_call.1} parent=31 // pred_region
          %s208 = sand.u32 %s28, 1
          %s209 = scalar_lea.sflag [#allocation3], %s208
          %s210 = sand.u32 %s28, 1
          %s211 = smul.addr %s210, 64
          %s212 = scalar_lea.vmem [#allocation2], %s211
          %s213 = smul.u32 16, %s18
          %s215 = ssub.s32 1024, 1024
          %216 = vsyncadd %s209, %s215
          %s217 = smul.addr %s213, 64
          %s218 = scalar_lea.hbm %s0, %s217
          %s219 = sshll.u32 %s212, 4
          %s220 = int_to_ptr.vmem [resolvable:$true] %s219
          %225 = dma.hbm_to_vmem [thread:$0]  %s218, 1024, %s220, %s209, 64, 64, 4
        $region36: #{tpu_custom_call.1} parent=31 // pred_fallthru
          _
      $region32: #{tpu_custom_call.1} parent=5 // pred_fallthru
        _
      %p226 = scmp.le.s32.totalorder 1, %s18
      %p227 = scmp.lt.s32.totalorder %s18, 3
      %p228 = pnand %p226, %p227
      %p229 = pneg %p228
      // Predicated region
      $region37: #{tpu_custom_call.1} parent=5 // pred_check
        _
      $region38: #{tpu_custom_call.1} parent=5 // pred_check_branch
        %231 = sbr.rel (%p228) target = $region40
      $region39: #{tpu_custom_call.1} parent=5 // pred_region
        %s232 = ssub.s32 %s18, 1
        %s233 = sand.u32 %s31, 1
        %s234 = scalar_lea.sflag [#allocation3], %s233
        %s235 = sand.u32 %s31, 1
        %s236 = smul.addr %s235, 64
        %s237 = scalar_lea.vmem [#allocation2], %s236
        // Predicated region
        $region41: #{tpu_custom_call.1} parent=39 // pred_check
          %p238 = pneg %p44
        $region42: #{tpu_custom_call.1} parent=39 // pred_check_branch
          %240 = sbr.rel (%p238) target = $region44
        $region43: #{tpu_custom_call.1} parent=39 // pred_region
          %241 = dma.done %s234, 1024
        $region44: #{tpu_custom_call.1} parent=39 // pred_fallthru
          _
        // Predicated region
        $region45: #{tpu_custom_call.1} parent=39 // pred_check
          %p242 = pneg %p65
        $region46: #{tpu_custom_call.1} parent=39 // pred_check_branch
          %244 = sbr.rel (%p242) target = $region48
        $region47: #{tpu_custom_call.1} parent=39 // pred_region
          %245 = dma.done [#allocation6], 1024
        $region48: #{tpu_custom_call.1} parent=39 // pred_fallthru
          _
        // Predicated region
        $region49: #{tpu_custom_call.1} parent=39 // pred_check
          %p246 = pneg %p107
        $region50: #{tpu_custom_call.1} parent=39 // pred_check_branch
          %248 = sbr.rel (%p246) target = $region52
        $region51: #{tpu_custom_call.1} parent=39 // pred_region
          %249 = dma.done [#allocation6], 1024
        $region52: #{tpu_custom_call.1} parent=39 // pred_fallthru
          _
        %s250 = sand.u32 %s31, 1
        %s251 = scalar_lea.sflag [#allocation3], %s250
        %s252 = sand.u32 %s31, 1
        %s253 = smul.addr %s252, 64
        %s254 = scalar_lea.vmem [#allocation2], %s253
        %p255 = pneg %p44
        %p256 = pneg %p41
        %p257 = pneg %p65
        %p258 = pneg %p62
        %p259 = pneg %p86
        %p260 = pneg %p83
        %p261 = pneg %p107
        %p262 = pneg %p104
        %p263 = pneg %p128
        %p264 = pneg %p125
        %p265 = pneg %p154
        %p266 = pneg %p151
        %s267 = sand.u32 %s141, 1
        %s268 = scalar_lea.sflag [#allocation4], %s267
        %s269 = sand.u32 %s141, 1
        %s270 = smul.addr %s269, 8
        %s271 = scalar_lea.vmem [#allocation8], %s270
        %s272 = smul.u32 16, %s23
        %v274 = vld [vmem:[%s237] sm:$0xf]
        %v275 = vld [vmem:[%s237 + $0x4] sm:$0xf]
        %v276 = vld [vmem:[%s237 + $0x8] sm:$0xf]
        %v277 = vld [vmem:[%s237 + $0xc] sm:$0xf]
        %v278 = vld [vmem:[%s237 + $0x10] sm:$0xf]
        %v279 = vld [vmem:[%s237 + $0x14] sm:$0xf]
        %v280 = vld [vmem:[%s237 + $0x18] sm:$0xf]
        %v281 = vld [vmem:[%s237 + $0x1c] sm:$0xf]
        %v282 = vld [vmem:[%s237 + $0x20] sm:$0xf]
        %v283 = vld [vmem:[%s237 + $0x24] sm:$0xf]
        %v284 = vld [vmem:[%s237 + $0x28] sm:$0xf]
        %v285 = vld [vmem:[%s237 + $0x2c] sm:$0xf]
        %v286 = vld [vmem:[%s237 + $0x30] sm:$0xf]
        %v287 = vld [vmem:[%s237 + $0x34] sm:$0xf]
        %v288 = vld [vmem:[%s237 + $0x38] sm:$0xf]
        %v289 = vld [vmem:[%s237 + $0x3c] sm:$0xf]
        %v290 = vld [vmem:[#allocation5] sm:$0xf]
        %v291 = vld [vmem:[#allocation5 + $0x4] sm:$0xf]
        %v292 = vld [vmem:[#allocation5 + $0x8] sm:$0xf]
        %v293 = vld [vmem:[#allocation5 + $0xc] sm:$0xf]
        %v294 = vld [vmem:[#allocation5 + $0x10] sm:$0xf]
        %v295 = vld [vmem:[#allocation5 + $0x14] sm:$0xf]
        %v296 = vld [vmem:[#allocation5 + $0x18] sm:$0xf]
        %v297 = vld [vmem:[#allocation5 + $0x1c] sm:$0xf]
        %v298 = vld [vmem:[#allocation5 + $0x20] sm:$0xf]
        %v299 = vld [vmem:[#allocation5 + $0x24] sm:$0xf]
        %v300 = vld [vmem:[#allocation5 + $0x28] sm:$0xf]
        %v301 = vld [vmem:[#allocation5 + $0x2c] sm:$0xf]
        %v302 = vld [vmem:[#allocation5 + $0x30] sm:$0xf]
        %v303 = vld [vmem:[#allocation5 + $0x34] sm:$0xf]
        %v304 = vld [vmem:[#allocation5 + $0x38] sm:$0xf]
        %v305 = vld [vmem:[#allocation5 + $0x3c] sm:$0xf]
        %v322 = vunpack.c.l.b16 %v274
        %v323 = vunpack.c.l.b16 %v275
        %v324 = vunpack.c.l.b16 %v276
        %v325 = vunpack.c.l.b16 %v277
        %v326 = vunpack.c.l.b16 %v278
        %v327 = vunpack.c.l.b16 %v279
        %v328 = vunpack.c.l.b16 %v280
        %v329 = vunpack.c.l.b16 %v281
        %v330 = vunpack.c.l.b16 %v282
        %v331 = vunpack.c.l.b16 %v283
        %v332 = vunpack.c.l.b16 %v284
        %v333 = vunpack.c.l.b16 %v285
        %v334 = vunpack.c.l.b16 %v286
        %v335 = vunpack.c.l.b16 %v287
        %v336 = vunpack.c.l.b16 %v288
        %v337 = vunpack.c.l.b16 %v289
        %v338 = vpack.c.b16 %v323, %v322
        %v339 = vpack.c.b16 %v325, %v324
        %v340 = vpack.c.b16 %v327, %v326
        %v341 = vpack.c.b16 %v329, %v328
        %v342 = vpack.c.b16 %v331, %v330
        %v343 = vpack.c.b16 %v333, %v332
        %v344 = vpack.c.b16 %v335, %v334
        %v345 = vpack.c.b16 %v337, %v336
        %v370 = vunpack.c.l.b16 %v290
        %v371 = vunpack.c.l.b16 %v291
        %v372 = vunpack.c.l.b16 %v292
        %v373 = vunpack.c.l.b16 %v293
        %v374 = vunpack.c.l.b16 %v294
        %v375 = vunpack.c.l.b16 %v295
        %v376 = vunpack.c.l.b16 %v296
        %v377 = vunpack.c.l.b16 %v297
        %v378 = vunpack.c.l.b16 %v298
        %v379 = vunpack.c.l.b16 %v299
        %v380 = vunpack.c.l.b16 %v300
        %v381 = vunpack.c.l.b16 %v301
        %v382 = vunpack.c.l.b16 %v302
        %v383 = vunpack.c.l.b16 %v303
        %v384 = vunpack.c.l.b16 %v304
        %v385 = vunpack.c.l.b16 %v305
        %v386 = vpack.c.b16 %v371, %v370
        %v387 = vpack.c.b16 %v373, %v372
        %v388 = vpack.c.b16 %v375, %v374
        %v389 = vpack.c.b16 %v377, %v376
        %v390 = vpack.c.b16 %v379, %v378
        %v391 = vpack.c.b16 %v381, %v380
        %v392 = vpack.c.b16 %v383, %v382
        %v393 = vpack.c.b16 %v385, %v384
        %402 = vmatprep.subr.bf16.mxu0 0
        %403 = vmatpush1.bf16.msra.mxu0 %v386
        %404 = vmatprep.subr.bf16.mxu0 0
        %405 = vmatpush1.bf16.msra.mxu0 %v387
        %406 = vmatprep.subr.bf16.mxu0 0
        %407 = vmatpush1.bf16.msra.mxu0 %v388
        %408 = vmatprep.subr.bf16.mxu0 0
        %409 = vmatpush1.bf16.msra.mxu0 %v389
        %410 = vmatprep.subr.bf16.mxu0 0
        %411 = vmatpush1.bf16.msra.mxu0 %v390
        %412 = vmatprep.subr.bf16.mxu0 0
        %413 = vmatpush1.bf16.msra.mxu0 %v391
        %414 = vmatprep.subr.bf16.mxu0 0
        %415 = vmatpush1.bf16.msra.mxu0 %v392
        %416 = vmatprep.subr.bf16.mxu0 0
        %417 = vmatpush1.bf16.msra.mxu0 %v393
        %418 = vmatprep.subr.bf16.mxu0 0
        %419 = vmatpush1.bf16.msra.mxu0 0
        %420 = vmatprep.subr.bf16.mxu0 0
        %421 = vmatpush1.bf16.msra.mxu0 0
        %422 = vmatprep.subr.bf16.mxu0 0
        %423 = vmatpush1.bf16.msra.mxu0 0
        %424 = vmatprep.subr.bf16.mxu0 0
        %425 = vmatpush1.bf16.msra.mxu0 0
        %426 = vmatprep.subr.bf16.mxu0 0
        %427 = vmatpush1.bf16.msra.mxu0 0
        %428 = vmatprep.subr.bf16.mxu0 0
        %429 = vmatpush1.bf16.msra.mxu0 0
        %430 = vmatprep.subr.bf16.mxu0 0
        %431 = vmatpush1.bf16.msra.mxu0 0
        %432 = vmatprep.subr.bf16.mxu0 0
        %433 = vmatpush1.bf16.msra.mxu0 0
        %434 = vmatprep.mubr.bf16.mxu0 0
        %435 = vmatmul.mubr.bf16.gmra.mrb[0].mxu0 %v338
        %v436 = vpop.f32.mrb[0].mxu0
        %v437 = vadd.f32 0.0, %v436
        %v438 = vpop.f32.mrb[0].mxu0
        %v439 = vpop.f32.mrb[0].mxu0
        %v440 = vadd.f32 0.0, %v439
        %v441 = vpop.f32.mrb[0].mxu0
        %442 = vmatprep.mubr.bf16.mxu0 0
        %443 = vmatmul.mubr.bf16.gmra.mrb[0].mxu0 %v339
        %v444 = vpop.f32.mrb[0].mxu0
        %v445 = vadd.f32 0.0, %v444
        %v446 = vpop.f32.mrb[0].mxu0
        %v447 = vpop.f32.mrb[0].mxu0
        %v448 = vadd.f32 0.0, %v447
        %v449 = vpop.f32.mrb[0].mxu0
        %450 = vmatprep.mubr.bf16.mxu0 0
        %451 = vmatmul.mubr.bf16.gmra.mrb[0].mxu0 %v340
        %v452 = vpop.f32.mrb[0].mxu0
        %v453 = vadd.f32 0.0, %v452
        %v454 = vpop.f32.mrb[0].mxu0
        %v455 = vpop.f32.mrb[0].mxu0
        %v456 = vadd.f32 0.0, %v455
        %v457 = vpop.f32.mrb[0].mxu0
        %458 = vmatprep.mubr.bf16.mxu0 0
        %459 = vmatmul.mubr.bf16.gmra.mrb[0].mxu0 %v341
        %v460 = vpop.f32.mrb[0].mxu0
        %v461 = vadd.f32 0.0, %v460
        %v462 = vpop.f32.mrb[0].mxu0
        %v463 = vpop.f32.mrb[0].mxu0
        %v464 = vadd.f32 0.0, %v463
        %v465 = vpop.f32.mrb[0].mxu0
        %466 = vmatprep.mubr.bf16.mxu0 0
        %467 = vmatmul.mubr.bf16.gmra.mrb[0].mxu0 %v342
        %v468 = vpop.f32.mrb[0].mxu0
        %v469 = vadd.f32 0.0, %v468
        %v470 = vpop.f32.mrb[0].mxu0
        %v471 = vpop.f32.mrb[0].mxu0
        %v472 = vadd.f32 0.0, %v471
        %v473 = vpop.f32.mrb[0].mxu0
        %474 = vmatprep.mubr.bf16.mxu0 0
        %475 = vmatmul.mubr.bf16.gmra.mrb[0].mxu0 %v343
        %v476 = vpop.f32.mrb[0].mxu0
        %v477 = vadd.f32 0.0, %v476
        %v478 = vpop.f32.mrb[0].mxu0
        %v479 = vpop.f32.mrb[0].mxu0
        %v480 = vadd.f32 0.0, %v479
        %v481 = vpop.f32.mrb[0].mxu0
        %482 = vmatprep.mubr.bf16.mxu0 0
        %483 = vmatmul.mubr.bf16.gmra.mrb[0].mxu0 %v344
        %v484 = vpop.f32.mrb[0].mxu0
        %v485 = vadd.f32 0.0, %v484
        %v486 = vpop.f32.mrb[0].mxu0
        %v487 = vpop.f32.mrb[0].mxu0
        %v488 = vadd.f32 0.0, %v487
        %v489 = vpop.f32.mrb[0].mxu0
        %490 = vmatprep.mubr.bf16.mxu0 0
        %491 = vmatmul.mubr.bf16.gmra.mrb[0].mxu0 %v345
        %v492 = vpop.f32.mrb[0].mxu0
        %v493 = vadd.f32 0.0, %v492
        %v494 = vpop.f32.mrb[0].mxu0
        %v495 = vpop.f32.mrb[0].mxu0
        %v496 = vadd.f32 0.0, %v495
        %v497 = vpop.f32.mrb[0].mxu0
        %498 = vdwg.mxu0
        %v499 = vtanh.pop %v437
        %v500 = vtanh.pop %v440
        %v501 = vtanh.pop %v445
        %v502 = vtanh.pop %v448
        %v503 = vtanh.pop %v453
        %v504 = vtanh.pop %v456
        %v505 = vtanh.pop %v461
        %v506 = vtanh.pop %v464
        %v507 = vtanh.pop %v469
        %v508 = vtanh.pop %v472
        %v509 = vtanh.pop %v477
        %v510 = vtanh.pop %v480
        %v511 = vtanh.pop %v485
        %v512 = vtanh.pop %v488
        %v513 = vtanh.pop %v493
        %v514 = vtanh.pop %v496
        %v515 = vld [vmem:[%s2] sm:$0x1]
        %v517 = vlaneseq
        %v518 = vshrl.u32 %v517, 7
        %v519 = vsub.s32 0, %v518
        %v520 = vrot.slane %v515, %v519
        %v522 = vmul.f32 %v499, %v520
        %v523 = vmul.f32 %v500, %v520
        %v524 = vmul.f32 %v501, %v520
        %v525 = vmul.f32 %v502, %v520
        %v526 = vmul.f32 %v503, %v520
        %v527 = vmul.f32 %v504, %v520
        %v528 = vmul.f32 %v505, %v520
        %v529 = vmul.f32 %v506, %v520
        %v530 = vmul.f32 %v507, %v520
        %v531 = vmul.f32 %v508, %v520
        %v532 = vmul.f32 %v509, %v520
        %v533 = vmul.f32 %v510, %v520
        %v534 = vmul.f32 %v511, %v520
        %v535 = vmul.f32 %v512, %v520
        %v536 = vmul.f32 %v513, %v520
        %v537 = vmul.f32 %v514, %v520
        %538 = vadd.xlane.f32.xlu0 %v522
        %v539 = vpop.xlane.xlu0 %538
        %540 = vadd.xlane.f32.xlu0 %v523
        %v541 = vpop.xlane.xlu0 %540
        %542 = vadd.xlane.f32.xlu0 %v524
        %v543 = vpop.xlane.xlu0 %542
        %544 = vadd.xlane.f32.xlu0 %v525
        %v545 = vpop.xlane.xlu0 %544
        %546 = vadd.xlane.f32.xlu0 %v526
        %v547 = vpop.xlane.xlu0 %546
        %548 = vadd.xlane.f32.xlu0 %v527
        %v549 = vpop.xlane.xlu0 %548
        %550 = vadd.xlane.f32.xlu0 %v528
        %v551 = vpop.xlane.xlu0 %550
        %552 = vadd.xlane.f32.xlu0 %v529
        %v553 = vpop.xlane.xlu0 %552
        %554 = vadd.xlane.f32.xlu0 %v530
        %v555 = vpop.xlane.xlu0 %554
        %556 = vadd.xlane.f32.xlu0 %v531
        %v557 = vpop.xlane.xlu0 %556
        %558 = vadd.xlane.f32.xlu0 %v532
        %v559 = vpop.xlane.xlu0 %558
        %560 = vadd.xlane.f32.xlu0 %v533
        %v561 = vpop.xlane.xlu0 %560
        %562 = vadd.xlane.f32.xlu0 %v534
        %v563 = vpop.xlane.xlu0 %562
        %564 = vadd.xlane.f32.xlu0 %v535
        %v565 = vpop.xlane.xlu0 %564
        %566 = vadd.xlane.f32.xlu0 %v536
        %v567 = vpop.xlane.xlu0 %566
        %568 = vadd.xlane.f32.xlu0 %v537
        %v569 = vpop.xlane.xlu0 %568
        %v586 = vlaneseq
        %v587 = vand.u32 %v586, 127
        %v588 = vlaneseq
        %v589 = vshrl.u32 %v588, 7
        %v590 = vsub.s32 %v587, %v589
        %v591 = vrot.slane %v539, %v590
        %v592 = vadd.s32 %v587, 4294967288
        %v593 = vlaneseq
        %v594 = vshrl.u32 %v593, 7
        %v595 = vsub.s32 %v592, %v594
        %v596 = vrot.slane %v541, %v595
        %vm597 = vcmask 130112
        %v598 = vsel %vm597, %v596, %v591
        %v599 = vlaneseq
        %v600 = vshrl.u32 %v599, 7
        %v601 = vsub.s32 %v587, %v600
        %v602 = vrot.slane %v543, %v601
        %v603 = vlaneseq
        %v604 = vshrl.u32 %v603, 7
        %v605 = vsub.s32 %v592, %v604
        %v606 = vrot.slane %v545, %v605
        %v607 = vsel %vm597, %v606, %v602
        %v608 = vlaneseq
        %v609 = vshrl.u32 %v608, 7
        %v610 = vsub.s32 %v587, %v609
        %v611 = vrot.slane %v547, %v610
        %v612 = vlaneseq
        %v613 = vshrl.u32 %v612, 7
        %v614 = vsub.s32 %v592, %v613
        %v615 = vrot.slane %v549, %v614
        %v616 = vsel %vm597, %v615, %v611
        %v617 = vlaneseq
        %v618 = vshrl.u32 %v617, 7
        %v619 = vsub.s32 %v587, %v618
        %v620 = vrot.slane %v551, %v619
        %v621 = vlaneseq
        %v622 = vshrl.u32 %v621, 7
        %v623 = vsub.s32 %v592, %v622
        %v624 = vrot.slane %v553, %v623
        %v625 = vsel %vm597, %v624, %v620
        %v626 = vlaneseq
        %v627 = vshrl.u32 %v626, 7
        %v628 = vsub.s32 %v587, %v627
        %v629 = vrot.slane %v555, %v628
        %v630 = vlaneseq
        %v631 = vshrl.u32 %v630, 7
        %v632 = vsub.s32 %v592, %v631
        %v633 = vrot.slane %v557, %v632
        %v634 = vsel %vm597, %v633, %v629
        %v635 = vlaneseq
        %v636 = vshrl.u32 %v635, 7
        %v637 = vsub.s32 %v587, %v636
        %v638 = vrot.slane %v559, %v637
        %v639 = vlaneseq
        %v640 = vshrl.u32 %v639, 7
        %v641 = vsub.s32 %v592, %v640
        %v642 = vrot.slane %v561, %v641
        %v643 = vsel %vm597, %v642, %v638
        %v644 = vlaneseq
        %v645 = vshrl.u32 %v644, 7
        %v646 = vsub.s32 %v587, %v645
        %v647 = vrot.slane %v563, %v646
        %v648 = vlaneseq
        %v649 = vshrl.u32 %v648, 7
        %v650 = vsub.s32 %v592, %v649
        %v651 = vrot.slane %v565, %v650
        %v652 = vsel %vm597, %v651, %v647
        %v653 = vlaneseq
        %v654 = vshrl.u32 %v653, 7
        %v655 = vsub.s32 %v587, %v654
        %v656 = vrot.slane %v567, %v655
        %v657 = vlaneseq
        %v658 = vshrl.u32 %v657, 7
        %v659 = vsub.s32 %v592, %v658
        %v660 = vrot.slane %v569, %v659
        %v661 = vsel %vm597, %v660, %v656
        %vm662 = vcmask 1041409
        %v663 = vsel %vm662, %v607, %v598
        %vm664 = vcmask 1042434
        %v665 = vsel %vm664, %v616, %v663
        %vm666 = vcmask 1043459
        %v667 = vsel %vm666, %v625, %v665
        %vm668 = vcmask 1044484
        %v669 = vsel %vm668, %v634, %v667
        %vm670 = vcmask 1045509
        %v671 = vsel %vm670, %v643, %v669
        %vm672 = vcmask 1046534
        %v673 = vsel %vm672, %v652, %v671
        %vm674 = vcmask 1047559
        %v675 = vsel %vm674, %v661, %v673
        %vm677 = vcmask 130048
        %v678 = vsel %vm677, %v675, -inf
        %679 = vmax.xlane.f32.xlu0 %v678
        %v680 = vpop.xlane.xlu0 %679
        %v682 = vlaneseq
        %v683 = vshrl.u32 %v682, 7
        %v684 = vsub.s32 0, %v683
        %v685 = vrot.slane %v680, %v684
        %v686 = vlaneseq
        %v687 = vshrl.u32 %v686, 7
        %v688 = vsub.s32 1, %v687
        %v689 = vrot.slane %v680, %v688
        %v690 = vlaneseq
        %v691 = vshrl.u32 %v690, 7
        %v692 = vsub.s32 2, %v691
        %v693 = vrot.slane %v680, %v692
        %v694 = vlaneseq
        %v695 = vshrl.u32 %v694, 7
        %v696 = vsub.s32 3, %v695
        %v697 = vrot.slane %v680, %v696
        %v698 = vlaneseq
        %v699 = vshrl.u32 %v698, 7
        %v700 = vsub.s32 4, %v699
        %v701 = vrot.slane %v680, %v700
        %v702 = vlaneseq
        %v703 = vshrl.u32 %v702, 7
        %v704 = vsub.s32 5, %v703
        %v705 = vrot.slane %v680, %v704
        %v706 = vlaneseq
        %v707 = vshrl.u32 %v706, 7
        %v708 = vsub.s32 6, %v707
        %v709 = vrot.slane %v680, %v708
        %v710 = vlaneseq
        %v711 = vshrl.u32 %v710, 7
        %v712 = vsub.s32 7, %v711
        %v713 = vrot.slane %v680, %v712
        %v722 = vsub.f32 %v539, %v685
        %v723 = vsub.f32 %v541, %v685
        %v724 = vsub.f32 %v543, %v689
        %v725 = vsub.f32 %v545, %v689
        %v726 = vsub.f32 %v547, %v693
        %v727 = vsub.f32 %v549, %v693
        %v728 = vsub.f32 %v551, %v697
        %v729 = vsub.f32 %v553, %v697
        %v730 = vsub.f32 %v555, %v701
        %v731 = vsub.f32 %v557, %v701
        %v732 = vsub.f32 %v559, %v705
        %v733 = vsub.f32 %v561, %v705
        %v734 = vsub.f32 %v563, %v709
        %v735 = vsub.f32 %v565, %v709
        %v736 = vsub.f32 %v567, %v713
        %v737 = vsub.f32 %v569, %v713
        %v738 = vmul.f32 %v722, 1.442695
        %v739 = vpow.pop %v738
        %v740 = vmul.f32 %v723, 1.442695
        %v741 = vpow.pop %v740
        %v742 = vmul.f32 %v724, 1.442695
        %v743 = vpow.pop %v742
        %v744 = vmul.f32 %v725, 1.442695
        %v745 = vpow.pop %v744
        %v746 = vmul.f32 %v726, 1.442695
        %v747 = vpow.pop %v746
        %v748 = vmul.f32 %v727, 1.442695
        %v749 = vpow.pop %v748
        %v750 = vmul.f32 %v728, 1.442695
        %v751 = vpow.pop %v750
        %v752 = vmul.f32 %v729, 1.442695
        %v753 = vpow.pop %v752
        %v754 = vmul.f32 %v730, 1.442695
        %v755 = vpow.pop %v754
        %v756 = vmul.f32 %v731, 1.442695
        %v757 = vpow.pop %v756
        %v758 = vmul.f32 %v732, 1.442695
        %v759 = vpow.pop %v758
        %v760 = vmul.f32 %v733, 1.442695
        %v761 = vpow.pop %v760
        %v762 = vmul.f32 %v734, 1.442695
        %v763 = vpow.pop %v762
        %v764 = vmul.f32 %v735, 1.442695
        %v765 = vpow.pop %v764
        %v766 = vmul.f32 %v736, 1.442695
        %v767 = vpow.pop %v766
        %v768 = vmul.f32 %v737, 1.442695
        %v769 = vpow.pop %v768
        %786 = vset.pattern.permute.xlu0 0
        %787 = vperm.xlu0 %786, %v739
        %v788 = vpop.permute.xlu0 %787
        %789 = vset.pattern.permute.xlu0 0
        %790 = vperm.xlu0 %789, %v741
        %v791 = vpop.permute.xlu0 %790
        %792 = vset.pattern.permute.xlu0 0
        %793 = vperm.xlu0 %792, %v743
        %v794 = vpop.permute.xlu0 %793
        %795 = vset.pattern.permute.xlu0 0
        %796 = vperm.xlu0 %795, %v745
        %v797 = vpop.permute.xlu0 %796
        %798 = vset.pattern.permute.xlu0 0
        %799 = vperm.xlu0 %798, %v747
        %v800 = vpop.permute.xlu0 %799
        %801 = vset.pattern.permute.xlu0 0
        %802 = vperm.xlu0 %801, %v749
        %v803 = vpop.permute.xlu0 %802
        %804 = vset.pattern.permute.xlu0 0
        %805 = vperm.xlu0 %804, %v751
        %v806 = vpop.permute.xlu0 %805
        %807 = vset.pattern.permute.xlu0 0
        %808 = vperm.xlu0 %807, %v753
        %v809 = vpop.permute.xlu0 %808
        %810 = vset.pattern.permute.xlu0 0
        %811 = vperm.xlu0 %810, %v755
        %v812 = vpop.permute.xlu0 %811
        %813 = vset.pattern.permute.xlu0 0
        %814 = vperm.xlu0 %813, %v757
        %v815 = vpop.permute.xlu0 %814
        %816 = vset.pattern.permute.xlu0 0
        %817 = vperm.xlu0 %816, %v759
        %v818 = vpop.permute.xlu0 %817
        %819 = vset.pattern.permute.xlu0 0
        %820 = vperm.xlu0 %819, %v761
        %v821 = vpop.permute.xlu0 %820
        %822 = vset.pattern.permute.xlu0 0
        %823 = vperm.xlu0 %822, %v763
        %v824 = vpop.permute.xlu0 %823
        %825 = vset.pattern.permute.xlu0 0
        %826 = vperm.xlu0 %825, %v765
        %v827 = vpop.permute.xlu0 %826
        %828 = vset.pattern.permute.xlu0 0
        %829 = vperm.xlu0 %828, %v767
        %v830 = vpop.permute.xlu0 %829
        %831 = vset.pattern.permute.xlu0 0
        %832 = vperm.xlu0 %831, %v769
        %v833 = vpop.permute.xlu0 %832
        %v834 = vlaneseq
        %v835 = vshrl.u32 %v834, 7
        %v836 = vsub.s32 %v587, %v835
        %v837 = vrot.slane %v788, %v836
        %v838 = vlaneseq
        %v839 = vshrl.u32 %v838, 7
        %v840 = vsub.s32 %v592, %v839
        %v841 = vrot.slane %v791, %v840
        %v842 = vsel %vm597, %v841, %v837
        %v843 = vlaneseq
        %v844 = vshrl.u32 %v843, 7
        %v845 = vsub.s32 %v587, %v844
        %v846 = vrot.slane %v794, %v845
        %v847 = vlaneseq
        %v848 = vshrl.u32 %v847, 7
        %v849 = vsub.s32 %v592, %v848
        %v850 = vrot.slane %v797, %v849
        %v851 = vsel %vm597, %v850, %v846
        %v852 = vlaneseq
        %v853 = vshrl.u32 %v852, 7
        %v854 = vsub.s32 %v587, %v853
        %v855 = vrot.slane %v800, %v854
        %v856 = vlaneseq
        %v857 = vshrl.u32 %v856, 7
        %v858 = vsub.s32 %v592, %v857
        %v859 = vrot.slane %v803, %v858
        %v860 = vsel %vm597, %v859, %v855
        %v861 = vlaneseq
        %v862 = vshrl.u32 %v861, 7
        %v863 = vsub.s32 %v587, %v862
        %v864 = vrot.slane %v806, %v863
        %v865 = vlaneseq
        %v866 = vshrl.u32 %v865, 7
        %v867 = vsub.s32 %v592, %v866
        %v868 = vrot.slane %v809, %v867
        %v869 = vsel %vm597, %v868, %v864
        %v870 = vlaneseq
        %v871 = vshrl.u32 %v870, 7
        %v872 = vsub.s32 %v587, %v871
        %v873 = vrot.slane %v812, %v872
        %v874 = vlaneseq
        %v875 = vshrl.u32 %v874, 7
        %v876 = vsub.s32 %v592, %v875
        %v877 = vrot.slane %v815, %v876
        %v878 = vsel %vm597, %v877, %v873
        %v879 = vlaneseq
        %v880 = vshrl.u32 %v879, 7
        %v881 = vsub.s32 %v587, %v880
        %v882 = vrot.slane %v818, %v881
        %v883 = vlaneseq
        %v884 = vshrl.u32 %v883, 7
        %v885 = vsub.s32 %v592, %v884
        %v886 = vrot.slane %v821, %v885
        %v887 = vsel %vm597, %v886, %v882
        %v888 = vlaneseq
        %v889 = vshrl.u32 %v888, 7
        %v890 = vsub.s32 %v587, %v889
        %v891 = vrot.slane %v824, %v890
        %v892 = vlaneseq
        %v893 = vshrl.u32 %v892, 7
        %v894 = vsub.s32 %v592, %v893
        %v895 = vrot.slane %v827, %v894
        %v896 = vsel %vm597, %v895, %v891
        %v897 = vlaneseq
        %v898 = vshrl.u32 %v897, 7
        %v899 = vsub.s32 %v587, %v898
        %v900 = vrot.slane %v830, %v899
        %v901 = vlaneseq
        %v902 = vshrl.u32 %v901, 7
        %v903 = vsub.s32 %v592, %v902
        %v904 = vrot.slane %v833, %v903
        %v905 = vsel %vm597, %v904, %v900
        %v906 = vsel %vm662, %v851, %v842
        %v907 = vsel %vm664, %v860, %v906
        %v908 = vsel %vm666, %v869, %v907
        %v909 = vsel %vm668, %v878, %v908
        %v910 = vsel %vm670, %v887, %v909
        %v911 = vsel %vm672, %v896, %v910
        %v912 = vsel %vm674, %v905, %v911
        %v914 = vsel %vm677, %v912, 0.0
        %915 = vadd.xlane.f32.xlu0 %v914
        %v916 = vpop.xlane.xlu0 %915
        %v917 = vrcp.pop %v916
        %v919 = vlaneseq
        %v920 = vshrl.u32 %v919, 7
        %v921 = vsub.s32 0, %v920
        %v922 = vrot.slane %v917, %v921
        %v923 = vlaneseq
        %v924 = vshrl.u32 %v923, 7
        %v925 = vsub.s32 1, %v924
        %v926 = vrot.slane %v917, %v925
        %v927 = vlaneseq
        %v928 = vshrl.u32 %v927, 7
        %v929 = vsub.s32 2, %v928
        %v930 = vrot.slane %v917, %v929
        %v931 = vlaneseq
        %v932 = vshrl.u32 %v931, 7
        %v933 = vsub.s32 3, %v932
        %v934 = vrot.slane %v917, %v933
        %v935 = vlaneseq
        %v936 = vshrl.u32 %v935, 7
        %v937 = vsub.s32 4, %v936
        %v938 = vrot.slane %v917, %v937
        %v939 = vlaneseq
        %v940 = vshrl.u32 %v939, 7
        %v941 = vsub.s32 5, %v940
        %v942 = vrot.slane %v917, %v941
        %v943 = vlaneseq
        %v944 = vshrl.u32 %v943, 7
        %v945 = vsub.s32 6, %v944
        %v946 = vrot.slane %v917, %v945
        %v947 = vlaneseq
        %v948 = vshrl.u32 %v947, 7
        %v949 = vsub.s32 7, %v948
        %v950 = vrot.slane %v917, %v949
        %v959 = vmul.f32 %v739, %v922
        %v960 = vmul.f32 %v741, %v922
        %v961 = vmul.f32 %v743, %v926
        %v962 = vmul.f32 %v745, %v926
        %v963 = vmul.f32 %v747, %v930
        %v964 = vmul.f32 %v749, %v930
        %v965 = vmul.f32 %v751, %v934
        %v966 = vmul.f32 %v753, %v934
        %v967 = vmul.f32 %v755, %v938
        %v968 = vmul.f32 %v757, %v938
        %v969 = vmul.f32 %v759, %v942
        %v970 = vmul.f32 %v761, %v942
        %v971 = vmul.f32 %v763, %v946
        %v972 = vmul.f32 %v765, %v946
        %v973 = vmul.f32 %v767, %v950
        %v974 = vmul.f32 %v769, %v950
        %976 = vset.pattern.permute.xlu0 0
        %977 = vperm.xlu0 %976, %v959
        %v978 = vpop.permute.xlu0 %977
        %981 = vset.pattern.permute.xlu0 0
        %982 = vperm.xlu0 %981, %v960
        %v983 = vpop.permute.xlu0 %982
        %986 = vset.pattern.permute.xlu0 0
        %987 = vperm.xlu0 %986, %v961
        %v988 = vpop.permute.xlu0 %987
        %991 = vset.pattern.permute.xlu0 0
        %992 = vperm.xlu0 %991, %v962
        %v993 = vpop.permute.xlu0 %992
        %996 = vset.pattern.permute.xlu0 0
        %997 = vperm.xlu0 %996, %v963
        %v998 = vpop.permute.xlu0 %997
        %1001 = vset.pattern.permute.xlu0 0
        %1002 = vperm.xlu0 %1001, %v964
        %v1003 = vpop.permute.xlu0 %1002
        %1006 = vset.pattern.permute.xlu0 0
        %1007 = vperm.xlu0 %1006, %v965
        %v1008 = vpop.permute.xlu0 %1007
        %1011 = vset.pattern.permute.xlu0 0
        %1012 = vperm.xlu0 %1011, %v966
        %v1013 = vpop.permute.xlu0 %1012
        %1016 = vset.pattern.permute.xlu0 0
        %1017 = vperm.xlu0 %1016, %v967
        %v1018 = vpop.permute.xlu0 %1017
        %1021 = vset.pattern.permute.xlu0 0
        %1022 = vperm.xlu0 %1021, %v968
        %v1023 = vpop.permute.xlu0 %1022
        %1026 = vset.pattern.permute.xlu0 0
        %1027 = vperm.xlu0 %1026, %v969
        %v1028 = vpop.permute.xlu0 %1027
        %1031 = vset.pattern.permute.xlu0 0
        %1032 = vperm.xlu0 %1031, %v970
        %v1033 = vpop.permute.xlu0 %1032
        %1036 = vset.pattern.permute.xlu0 0
        %1037 = vperm.xlu0 %1036, %v971
        %v1038 = vpop.permute.xlu0 %1037
        %1041 = vset.pattern.permute.xlu0 0
        %1042 = vperm.xlu0 %1041, %v972
        %v1043 = vpop.permute.xlu0 %1042
        %1046 = vset.pattern.permute.xlu0 0
        %1047 = vperm.xlu0 %1046, %v973
        %v1048 = vpop.permute.xlu0 %1047
        %1051 = vset.pattern.permute.xlu0 0
        %1052 = vperm.xlu0 %1051, %v974
        %v1053 = vpop.permute.xlu0 %1052
        %v1055 = vmul.f32 %v499, %v978
        %v1056 = vmul.f32 %v500, %v983
        %v1057 = vmul.f32 %v501, %v988
        %v1058 = vmul.f32 %v502, %v993
        %v1059 = vmul.f32 %v503, %v998
        %v1060 = vmul.f32 %v504, %v1003
        %v1061 = vmul.f32 %v505, %v1008
        %v1062 = vmul.f32 %v506, %v1013
        %v1063 = vmul.f32 %v507, %v1018
        %v1064 = vmul.f32 %v508, %v1023
        %v1065 = vmul.f32 %v509, %v1028
        %v1066 = vmul.f32 %v510, %v1033
        %v1067 = vmul.f32 %v511, %v1038
        %v1068 = vmul.f32 %v512, %v1043
        %v1069 = vmul.f32 %v513, %v1048
        %v1070 = vmul.f32 %v514, %v1053
        %v1071 = vadd.f32 %v1055, %v1056
        %v1072 = vrot.slane %v1071, 4
        %v1073 = vadd.f32 %v1071, %v1072
        %v1074 = vrot.slane %v1073, 2
        %v1075 = vadd.f32 %v1073, %v1074
        %v1076 = vrot.slane %v1075, 1
        %v1077 = vadd.f32 %v1075, %v1076
        %v1078 = vadd.f32 %v1057, %v1058
        %v1079 = vrot.slane %v1078, 4
        %v1080 = vadd.f32 %v1078, %v1079
        %v1081 = vrot.slane %v1080, 2
        %v1082 = vadd.f32 %v1080, %v1081
        %v1083 = vrot.slane %v1082, 1
        %v1084 = vadd.f32 %v1082, %v1083
        %v1085 = vadd.f32 %v1059, %v1060
        %v1086 = vrot.slane %v1085, 4
        %v1087 = vadd.f32 %v1085, %v1086
        %v1088 = vrot.slane %v1087, 2
        %v1089 = vadd.f32 %v1087, %v1088
        %v1090 = vrot.slane %v1089, 1
        %v1091 = vadd.f32 %v1089, %v1090
        %v1092 = vadd.f32 %v1061, %v1062
        %v1093 = vrot.slane %v1092, 4
        %v1094 = vadd.f32 %v1092, %v1093
        %v1095 = vrot.slane %v1094, 2
        %v1096 = vadd.f32 %v1094, %v1095
        %v1097 = vrot.slane %v1096, 1
        %v1098 = vadd.f32 %v1096, %v1097
        %v1099 = vadd.f32 %v1063, %v1064
        %v1100 = vrot.slane %v1099, 4
        %v1101 = vadd.f32 %v1099, %v1100
        %v1102 = vrot.slane %v1101, 2
        %v1103 = vadd.f32 %v1101, %v1102
        %v1104 = vrot.slane %v1103, 1
        %v1105 = vadd.f32 %v1103, %v1104
        %v1106 = vadd.f32 %v1065, %v1066
        %v1107 = vrot.slane %v1106, 4
        %v1108 = vadd.f32 %v1106, %v1107
        %v1109 = vrot.slane %v1108, 2
        %v1110 = vadd.f32 %v1108, %v1109
        %v1111 = vrot.slane %v1110, 1
        %v1112 = vadd.f32 %v1110, %v1111
        %v1113 = vadd.f32 %v1067, %v1068
        %v1114 = vrot.slane %v1113, 4
        %v1115 = vadd.f32 %v1113, %v1114
        %v1116 = vrot.slane %v1115, 2
        %v1117 = vadd.f32 %v1115, %v1116
        %v1118 = vrot.slane %v1117, 1
        %v1119 = vadd.f32 %v1117, %v1118
        %v1120 = vadd.f32 %v1069, %v1070
        %v1121 = vrot.slane %v1120, 4
        %v1122 = vadd.f32 %v1120, %v1121
        %v1123 = vrot.slane %v1122, 2
        %v1124 = vadd.f32 %v1122, %v1123
        %v1125 = vrot.slane %v1124, 1
        %v1126 = vadd.f32 %v1124, %v1125
        %v1127 = vpack.c.bf16 %v1077, %v1077
        %v1128 = vpack.c.bf16 %v1084, %v1084
        %v1129 = vpack.c.bf16 %v1091, %v1091
        %v1130 = vpack.c.bf16 %v1098, %v1098
        %v1131 = vpack.c.bf16 %v1105, %v1105
        %v1132 = vpack.c.bf16 %v1112, %v1112
        %v1133 = vpack.c.bf16 %v1119, %v1119
        %v1134 = vpack.c.bf16 %v1126, %v1126
        %v1135 = vld [vmem:[#allocation7] sm:$0xf]
        %v1136 = vld [vmem:[#allocation7 + $0x4] sm:$0xf]
        %v1137 = vld [vmem:[#allocation7 + $0x8] sm:$0xf]
        %v1138 = vld [vmem:[#allocation7 + $0xc] sm:$0xf]
        %v1139 = vld [vmem:[#allocation7 + $0x10] sm:$0xf]
        %v1140 = vld [vmem:[#allocation7 + $0x14] sm:$0xf]
        %v1141 = vld [vmem:[#allocation7 + $0x18] sm:$0xf]
        %v1142 = vld [vmem:[#allocation7 + $0x1c] sm:$0xf]
        %v1143 = vld [vmem:[#allocation7 + $0x20] sm:$0xf]
        %v1144 = vld [vmem:[#allocation7 + $0x24] sm:$0xf]
        %v1145 = vld [vmem:[#allocation7 + $0x28] sm:$0xf]
        %v1146 = vld [vmem:[#allocation7 + $0x2c] sm:$0xf]
        %v1147 = vld [vmem:[#allocation7 + $0x30] sm:$0xf]
        %v1148 = vld [vmem:[#allocation7 + $0x34] sm:$0xf]
        %v1149 = vld [vmem:[#allocation7 + $0x38] sm:$0xf]
        %v1150 = vld [vmem:[#allocation7 + $0x3c] sm:$0xf]
        %v1151 = vld [vmem:[%s4] sm:$0x1]
        %v1153 = vlaneseq
        %v1154 = vshrl.u32 %v1153, 7
        %v1155 = vsub.s32 0, %v1154
        %v1156 = vrot.slane %v1151, %v1155
        %v1166 = vunpack.c.l.b16 %v1127
        %v1167 = vunpack.c.l.b16 %v1128
        %v1168 = vunpack.c.l.b16 %v1129
        %v1169 = vunpack.c.l.b16 %v1130
        %v1170 = vunpack.c.l.b16 %v1131
        %v1171 = vunpack.c.l.b16 %v1132
        %v1172 = vunpack.c.l.b16 %v1133
        %v1173 = vunpack.c.l.b16 %v1134
        %v1174 = vsel %vm662, %v1167, %v1166
        %v1175 = vsel %vm664, %v1168, %v1174
        %v1176 = vsel %vm666, %v1169, %v1175
        %v1177 = vsel %vm668, %v1170, %v1176
        %v1178 = vsel %vm670, %v1171, %v1177
        %v1179 = vsel %vm672, %v1172, %v1178
        %v1180 = vsel %vm674, %v1173, %v1179
        %v1181 = vpack.c.b16 %v1180, %v1180
        %v1199 = vunpack.c.l.b16 %v1135
        %v1200 = vunpack.c.l.b16 %v1136
        %v1201 = vunpack.c.l.b16 %v1137
        %v1202 = vunpack.c.l.b16 %v1138
        %v1203 = vunpack.c.l.b16 %v1139
        %v1204 = vunpack.c.l.b16 %v1140
        %v1205 = vunpack.c.l.b16 %v1141
        %v1206 = vunpack.c.l.b16 %v1142
        %v1207 = vunpack.c.l.b16 %v1143
        %v1208 = vunpack.c.l.b16 %v1144
        %v1209 = vunpack.c.l.b16 %v1145
        %v1210 = vunpack.c.l.b16 %v1146
        %v1211 = vunpack.c.l.b16 %v1147
        %v1212 = vunpack.c.l.b16 %v1148
        %v1213 = vunpack.c.l.b16 %v1149
        %v1214 = vunpack.c.l.b16 %v1150
        %v1215 = vpack.c.b16 %v1200, %v1199
        %v1216 = vpack.c.b16 %v1202, %v1201
        %v1217 = vpack.c.b16 %v1204, %v1203
        %v1218 = vpack.c.b16 %v1206, %v1205
        %v1219 = vpack.c.b16 %v1208, %v1207
        %v1220 = vpack.c.b16 %v1210, %v1209
        %v1221 = vpack.c.b16 %v1212, %v1211
        %v1222 = vpack.c.b16 %v1214, %v1213
        %1231 = vmatprep.subr.bf16.mxu0 0
        %1232 = vmatpush1.bf16.msra.mxu0 %v1215
        %1233 = vmatprep.subr.bf16.mxu0 0
        %1234 = vmatpush1.bf16.msra.mxu0 %v1216
        %1235 = vmatprep.subr.bf16.mxu0 0
        %1236 = vmatpush1.bf16.msra.mxu0 %v1217
        %1237 = vmatprep.subr.bf16.mxu0 0
        %1238 = vmatpush1.bf16.msra.mxu0 %v1218
        %1239 = vmatprep.subr.bf16.mxu0 0
        %1240 = vmatpush1.bf16.msra.mxu0 %v1219
        %1241 = vmatprep.subr.bf16.mxu0 0
        %1242 = vmatpush1.bf16.msra.mxu0 %v1220
        %1243 = vmatprep.subr.bf16.mxu0 0
        %1244 = vmatpush1.bf16.msra.mxu0 %v1221
        %1245 = vmatprep.subr.bf16.mxu0 0
        %1246 = vmatpush1.bf16.msra.mxu0 %v1222
        %1247 = vmatprep.subr.bf16.mxu0 0
        %1248 = vmatpush1.bf16.msra.mxu0 0
        %1249 = vmatprep.subr.bf16.mxu0 0
        %1250 = vmatpush1.bf16.msra.mxu0 0
        %1251 = vmatprep.subr.bf16.mxu0 0
        %1252 = vmatpush1.bf16.msra.mxu0 0
        %1253 = vmatprep.subr.bf16.mxu0 0
        %1254 = vmatpush1.bf16.msra.mxu0 0
        %1255 = vmatprep.subr.bf16.mxu0 0
        %1256 = vmatpush1.bf16.msra.mxu0 0
        %1257 = vmatprep.subr.bf16.mxu0 0
        %1258 = vmatpush1.bf16.msra.mxu0 0
        %1259 = vmatprep.subr.bf16.mxu0 0
        %1260 = vmatpush1.bf16.msra.mxu0 0
        %1261 = vmatprep.subr.bf16.mxu0 0
        %1262 = vmatpush1.bf16.msra.mxu0 0
        %1263 = vmatprep.mubr.bf16.mxu0 0
        %1264 = vmatmul.mubr.bf16.gmra.mrb[0].mxu0 %v1181
        %v1265 = vpop.f32.mrb[0].mxu0
        %v1266 = vadd.f32 %v1156, %v1265
        %v1267 = vpop.f32.mrb[0].mxu0
        %v1268 = vpop.f32.mrb[0].mxu0
        %v1269 = vpop.f32.mrb[0].mxu0
        %1270 = vdwg.mxu0
        %1271 = vst [vmem:[%s271] sm:$0xff] %v1266
        %s1272 = sand.u32 %s141, 1
        %s1273 = scalar_lea.sflag [#allocation4], %s1272
        %s1274 = sand.u32 %s141, 1
        %s1275 = smul.addr %s1274, 8
        %s1276 = scalar_lea.vmem [#allocation8], %s1275
        // Predicated region
        $region53: #{tpu_custom_call.1} parent=39 // pred_check
          %p1277 = pneg %p151
        $region54: #{tpu_custom_call.1} parent=39 // pred_check_branch
          %1279 = sbr.rel (%p1277) target = $region56
        $region55: #{tpu_custom_call.1} parent=39 // pred_region
          %s1281 = ssub.s32 128, 128
          %1282 = vsyncadd %s1273, %s1281
          %s1283 = smul.addr %s23, 128
          %s1284 = scalar_lea.hbm %s5, %s1283
          %s1286 = sshll.u32 %s1276, 4
          %s1287 = int_to_ptr.vmem [resolvable:$true] %s1286
          %1289 = dma.vmem_to_hbm [thread:$0]  %s1287, 128, %s1284, %s1273
        $region56: #{tpu_custom_call.1} parent=39 // pred_fallthru
          _
      $region40: #{tpu_custom_call.1} parent=5 // pred_fallthru
        _
      %p1290 = scmp.le.s32.totalorder 2, %s18
      // Predicated region
      $region57: #{tpu_custom_call.1} parent=5 // pred_check
        %p1291 = pneg %p1290
      $region58: #{tpu_custom_call.1} parent=5 // pred_check_branch
        %1293 = sbr.rel (%p1291) target = $region60
      $region59: #{tpu_custom_call.1} parent=5 // pred_region
        %s1294 = ssub.s32 %s18, 2
        // Predicated region
        $region61: #{tpu_custom_call.1} parent=59 // pred_check
          %p1295 = pneg %p157
        $region62: #{tpu_custom_call.1} parent=59 // pred_check_branch
          %1297 = sbr.rel (%p1295) target = $region64
        $region63: #{tpu_custom_call.1} parent=59 // pred_region
          %s1298 = sand.u32 %s142, 1
          %s1299 = scalar_lea.sflag [#allocation4], %s1298
          %s1300 = sand.u32 %s142, 1
          %s1301 = smul.addr %s1300, 8
          %s1302 = scalar_lea.vmem [#allocation8], %s1301
          %1303 = dma.done %s1299, 128
        $region64: #{tpu_custom_call.1} parent=59 // pred_fallthru
          _
      $region60: #{tpu_custom_call.1} parent=5 // pred_fallthru
        _
    $region6: #{tpu_custom_call.1} parent=1 // loop_footer
      %s22 = sadd.s32 1, %s18
    $region7: #{tpu_custom_call.1} parent=1 // loop_footer_branch
      %17 = sbr.rel target = $region3
    $region8: #{tpu_custom_call.1} parent=1 // loop_exit
      _
    %1304 = vsyncpa [#allocation3], 1
    %s1305 = scalar_lea.sflag [#allocation3], 1
    %1306 = vsyncpa %s1305, 1
    %1307 = vsyncpa [#allocation6], 1
    %1308 = vsyncpa [#allocation4], 1
    %s1309 = scalar_lea.sflag [#allocation4], 1
    %1310 = vsyncpa %s1309, 1

</llo_original>
